<compile_context>
chip_gen: v5e
topology: v5e:2x2
jax: 0.10.0
libtpu: 0.0.40
codegen_flags: <defaults>
</compile_context>

<pallas_src>
import functools

import jax
import jax.numpy as jnp
from jax.experimental import pallas as pl
from jax.experimental.pallas import tpu as pltpu


# ----------------------------------------------------------------------------
# Kernel: three lane-dense bf16 matmuls (f32 accumulation) + folded-BN biases.
# ----------------------------------------------------------------------------
def _aux_head_kernel(x_ref, wpc_ref, w2_ref, wl_ref, bias_ref, out_ref, *, n1, n2):
    # x_ref: (TB, CHW_pad) bf16.  ReLU on the bf16 tile (commutes with the cast
    # done in the wrapper); MXU gets bf16 operands with f32 accumulation.
    x = jnp.maximum(x_ref[...], 0.0)

    b1 = bias_ref[:, :n1]             # (1, 512)   folded BN1 shift
    b2 = bias_ref[:, n1:n1 + n2]      # (1, 768)   folded BN2 shift
    bl = bias_ref[:, n1 + n2:]        # (1, n_pad) linear bias (lane padded)

    # AvgPool(5) + Conv1x1 + BN1 scale folded into one matmul: (TB,CHW)@(CHW,512)
    h1 = jnp.dot(x, wpc_ref[...], preferred_element_type=jnp.float32)
    h1 = jnp.maximum(h1 + b1, 0.0)

    # Conv2x2 over the 2x2 pooled map (+ BN2 scale folded): (TB,512)@(512,768)
    h2 = jnp.dot(h1.astype(jnp.bfloat16), w2_ref[...],
                 preferred_element_type=jnp.float32)
    h2 = jnp.maximum(h2 + b2, 0.0)

    # Linear(768, n_classes) padded to 128 lanes -> unmasked lane-dense store.
    out_ref[...] = jnp.dot(h2.astype(jnp.bfloat16), wl_ref[...],
                           preferred_element_type=jnp.float32) + bl


# ----------------------------------------------------------------------------
# One-time weight preparation (hoisted out of the per-call path).
# ----------------------------------------------------------------------------
def prepare_aux_head_params(params, input_size, eps=1e-5, lane_pad=128, k_align=256):
    assert input_size in (7, 8)
    stride = input_size - 5
    pool_k = 5
    H = W = input_size
    n_mid = params["conv1_w"].shape[0]        # 128
    C = params["conv1_w"].shape[1]
    n_hidden = params["conv2_w"].shape[0]     # 768
    n_classes = params["linear_w"].shape[0]
    chw = C * H * W
    chw_pad = ((chw + k_align - 1) // k_align) * k_align   # MXU K alignment

    # Pooling masks for the 2x2 pooled output positions: mask[p, h, w].
    masks = []
    for ph in range(2):
        for pw in range(2):
            m = jnp.zeros((H, W), jnp.float32)
            m = m.at[ph * stride:ph * stride + pool_k,
                     pw * stride:pw * stride + pool_k].set(1.0 / (pool_k * pool_k))
            masks.append(m)
    mask = jnp.stack(masks, 0)                                    # (4, H, W)

    # Fold AvgPool + Conv1x1:
    #   W_pc[c*H*W + h*W + w, p*128 + o] = mask[p, h, w] * conv1_w[o, c]
    # Rows match a plain NCHW flatten of the input.
    w1 = params["conv1_w"][:, :, 0, 0]                            # (128, C)
    wpc = jnp.einsum("phw,oc->chwpo", mask, w1).reshape(chw, 4 * n_mid)

    s1 = params["bn1_gamma"] / jnp.sqrt(params["bn1_var"] + eps)
    b1 = params["bn1_beta"] - params["bn1_mean"] * s1
    s1_t = jnp.tile(s1, 4).reshape(1, 4 * n_mid)                  # per (p, channel)
    b1_t = jnp.tile(b1, 4).reshape(1, 4 * n_mid)

    # Fold BN1 scale into wpc columns (in f32, single bf16 cast afterwards),
    # and zero-pad K (rows) to the aligned contraction size.
    wpc = wpc * s1_t
    wpc_pad = jnp.zeros((chw_pad, 4 * n_mid), jnp.float32).at[:chw].set(wpc)

    # Conv2x2 weight (768, 128, 2, 2) -> (4*128, 768); row p*128 + cin matches
    # the h1 column layout (p = kh*2 + kw).  Fold BN2 scale into its columns.
    w2 = jnp.transpose(params["conv2_w"], (2, 3, 1, 0)).reshape(4 * n_mid, n_hidden)
    s2 = params["bn2_gamma"] / jnp.sqrt(params["bn2_var"] + eps)
    b2 = params["bn2_beta"] - params["bn2_mean"] * s2
    w2 = w2 * s2[None, :]

    # Linear: (n_classes, 768) -> (768, n_pad), zero-padded lane-dense.
    n_pad = max(lane_pad, ((n_classes + lane_pad - 1) // lane_pad) * lane_pad)
    wl = jnp.zeros((n_hidden, n_pad), jnp.float32).at[:, :n_classes].set(
        params["linear_w"].T)
    bl = jnp.zeros((1, n_pad), jnp.float32).at[0, :n_classes].set(params["linear_b"])

    # All remaining biases as a single lane-dense f32 operand.
    bias = jnp.concatenate([b1_t, b2.reshape(1, -1), bl], axis=1)  # (1, 512+768+n_pad)

    return {
        "wpc": wpc_pad.astype(jnp.bfloat16),
        "w2": w2.astype(jnp.bfloat16),
        "wl": wl.astype(jnp.bfloat16),
        "bias": bias,
        "n1": 4 * n_mid, "n2": n_hidden,
        "n_classes": n_classes, "n_pad": n_pad,
        "input_size": input_size, "C": C,
        "chw": chw, "chw_pad": chw_pad,
    }


def _pick_batch_tile(B, bytes_per_row, weight_bytes, budget_bytes=24 << 20,
                     min_steps=2):
    """Batch tile: multiple of 8, fits a VMEM byte budget, >=2 grid steps when
    the batch allows it (v7x has 2 TensorCores; no-op elsewhere)."""
    b8 = ((B + 7) // 8) * 8
    avail = max(budget_bytes - weight_bytes, 1 << 20)
    cap = max(8, min(512, int(avail // max(bytes_per_row, 1))))
    cap = (cap // 8) * 8
    tb = max(8, min(b8, cap))
    if b8 >= 16 and b8 // tb < min_steps:
        tb = max(8, ((b8 // min_steps) // 8) * 8)
    b_pad = ((b8 + tb - 1) // tb) * tb
    return tb, b_pad


# ----------------------------------------------------------------------------
# Wrapper.
# ----------------------------------------------------------------------------
def auxiliary_head_forward(x_nchw, prep):
    """x_nchw: (B, C, H, W) float32, PyTorch layout."""
    B, C, H, W = x_nchw.shape
    assert C == prep["C"] and H == prep["input_size"] and W == prep["input_size"]
    chw, chw_pad = prep["chw"], prep["chw_pad"]
    n_pad, n_classes = prep["n_pad"], prep["n_classes"]
    n1, n2 = prep["n1"], prep["n2"]
    wpc, w2, wl, bias = prep["wpc"], prep["w2"], prep["wl"], prep["bias"]

    # VMEM budget: weights are grid-resident; x / out tiles are double-buffered.
    weight_bytes = 2 * (wpc.size * 2 + w2.size * 2 + wl.size * 2 + 8 * bias.size * 4)
    bytes_per_row = 4 * chw_pad + 8 * n_pad + 4 * (n1 + n2)
    tb, b_pad = _pick_batch_tile(B, bytes_per_row, weight_bytes)
    grid = (b_pad // tb,)

    # bf16 activations, zero-padded to (b_pad, chw_pad): halves the per-step DMA
    # and gives full sublane packing / unmasked K-aligned loads.
    x = x_nchw.reshape(B, chw).astype(jnp.bfloat16)
    x = jnp.pad(x, ((0, b_pad - B), (0, chw_pad - chw)))

    footprint = weight_bytes + tb * bytes_per_row
    vmem_limit = int(max(32 << 20, min(int(footprint * 1.5), 48 << 20)))

    flops = 2 * b_pad * (chw_pad * n1 + n1 * n2 + n2 * n_pad)
    bytes_accessed = (x.size * 2 + wpc.size * 2 + w2.size * 2 + wl.size * 2
                      + bias.size * 4 + b_pad * n_pad * 4)

    def _resident(shape):
        return pl.BlockSpec(shape, lambda i: (0, 0))   # weights stay in VMEM

    kernel = functools.partial(_aux_head_kernel, n1=n1, n2=n2)

    out = pl.pallas_call(
        kernel,
        out_shape=jax.ShapeDtypeStruct((b_pad, n_pad), jnp.float32),
        grid=grid,
        in_specs=[
            pl.BlockSpec((tb, chw_pad), lambda i: (i, 0)),   # activations, batched
            _resident(wpc.shape),
            _resident(w2.shape),
            _resident(wl.shape),
            _resident(bias.shape),
        ],
        out_specs=pl.BlockSpec((tb, n_pad), lambda i: (i, 0)),
        compiler_params=pltpu.CompilerParams(
            dimension_semantics=("parallel",),
            vmem_limit_bytes=vmem_limit),
        cost_estimate=pl.CostEstimate(
            flops=flops, transcendentals=0, bytes_accessed=bytes_accessed),
    )(x, wpc, w2, wl, bias)
    return out[:B, :n_classes]


# ----------------------------------------------------------------------------
# Pure-JAX reference (f32, HIGHEST) for correctness.
# ----------------------------------------------------------------------------
def reference_forward(x_nchw, params, input_size):
    eps = 1e-5
    stride = input_size - 5
    x = jnp.maximum(x_nchw, 0.0)
    pooled = jnp.stack(
        [jnp.stack(
            [jnp.mean(x[:, :, ph * stride:ph * stride + 5,
                         pw * stride:pw * stride + 5], axis=(2, 3))
             for pw in range(2)], axis=-1)
         for ph in range(2)], axis=-2)                       # (B, C, 2, 2)
    h1 = jnp.einsum("bchw,oc->bohw", pooled, params["conv1_w"][:, :, 0, 0],
                    precision="highest")
    s1 = params["bn1_gamma"] / jnp.sqrt(params["bn1_var"] + eps)
    b1 = params["bn1_beta"] - params["bn1_mean"] * s1
    h1 = jnp.maximum(h1 * s1[None, :, None, None] + b1[None, :, None, None], 0.0)
    h2 = jnp.einsum("bchw,ochw->bo", h1, params["conv2_w"], precision="highest")
    s2 = params["bn2_gamma"] / jnp.sqrt(params["bn2_var"] + eps)
    b2 = params["bn2_beta"] - params["bn2_mean"] * s2
    h2 = jnp.maximum(h2 * s2 + b2, 0.0)
    return jnp.dot(h2, params["linear_w"].T, precision="highest") + params["linear_b"]


def make_params(key, C, n_classes):
    ks = jax.random.split(key, 12)
    f32 = jnp.float32
    return {
        "conv1_w": 0.1 * jax.random.normal(ks[0], (128, C, 1, 1), f32),
        "bn1_gamma": 1.0 + 0.1 * jax.random.normal(ks[1], (128,), f32),
        "bn1_beta": 0.1 * jax.random.normal(ks[2], (128,), f32),
        "bn1_mean": 0.05 * jax.random.normal(ks[3], (128,), f32),
        "bn1_var": 1.0 + 0.1 * jnp.abs(jax.random.normal(ks[4], (128,), f32)),
        "conv2_w": 0.05 * jax.random.normal(ks[5], (768, 128, 2, 2), f32),
        "bn2_gamma": 1.0 + 0.1 * jax.random.normal(ks[6], (768,), f32),
        "bn2_beta": 0.1 * jax.random.normal(ks[7], (768,), f32),
        "bn2_mean": 0.05 * jax.random.normal(ks[8], (768,), f32),
        "bn2_var": 1.0 + 0.1 * jnp.abs(jax.random.normal(ks[9], (768,), f32)),
        "linear_w": 0.05 * jax.random.normal(ks[10], (n_classes, 768), f32),
        "linear_b": 0.01 * jax.random.normal(ks[11], (n_classes,), f32),
    }


if __name__ == "__main__":
    key = jax.random.PRNGKey(0)
    configs = [
        # (1) lane-aligned CHW, tiny batch
        dict(B=2, C=4, input_size=8, n_classes=10),
        # (2) exercises CHW padding (196 -> 256) and batch padding (5 -> 8)
        dict(B=5, C=4, input_size=7, n_classes=10),
    ]
    for cfg in configs:
        key, k_x, k_p = jax.random.split(key, 3)
        x = jax.random.normal(
            k_x, (cfg["B"], cfg["C"], cfg["input_size"], cfg["input_size"]),
            jnp.float32)
        params = make_params(k_p, cfg["C"], cfg["n_classes"])

        # One-time weight prep (constants for an inference head).
        prep = prepare_aux_head_params(params, cfg["input_size"])

        logits = jax.block_until_ready(auxiliary_head_forward(x, prep))
        ref = reference_forward(x, params, cfg["input_size"])

        assert logits.shape == (cfg["B"], cfg["n_classes"])
        # bf16 weights/activations with f32 accumulation vs f32 HIGHEST reference.
        max_diff = jnp.max(jnp.abs(logits - ref))
        assert jnp.allclose(logits, ref, rtol=5e-2, atol=2e-2), (
            f"max abs diff {max_diff} for cfg {cfg}")

    print("KERNEL_OK")
</pallas_src>

<mosaic_0001>
module attributes {stable_mosaic.version = 11 : i64} {
  func.func @_aux_head_kernel(%arg0: i32, %arg1: memref<8x256xbf16, #tpu.memory_space<vmem>>, %arg2: memref<256x512xbf16, #tpu.memory_space<vmem>>, %arg3: memref<512x768xbf16, #tpu.memory_space<vmem>>, %arg4: memref<768x128xbf16, #tpu.memory_space<vmem>>, %arg5: memref<1x1408xf32, #tpu.memory_space<vmem>>, %arg6: memref<8x128xf32, #tpu.memory_space<vmem>>) attributes {dimension_semantics = [#tpu.dimension_semantics<parallel>], iteration_bounds = array<i64: 1>, scalar_prefetch = 0 : i64, scratch_operands = 0 : i64, tpu.core_type = #tpu.core_type<tc>, window_params = [{transform_indices = @transform_0, window_bounds = array<i64: 8, 256>}, {pipeline_mode = #tpu.pipeline_mode<synchronous>, transform_indices = @transform_1, window_bounds = array<i64: 256, 512>}, {pipeline_mode = #tpu.pipeline_mode<synchronous>, transform_indices = @transform_2, window_bounds = array<i64: 512, 768>}, {pipeline_mode = #tpu.pipeline_mode<synchronous>, transform_indices = @transform_3, window_bounds = array<i64: 768, 128>}, {pipeline_mode = #tpu.pipeline_mode<synchronous>, transform_indices = @transform_4, window_bounds = array<i64: 1, 1408>}, {transform_indices = @transform_5, window_bounds = array<i64: 8, 128>}]} {
    %c0 = arith.constant 0 : index
    %c0_0 = arith.constant 0 : index
    %0 = vector.load %arg1[%c0, %c0_0] : memref<8x256xbf16, #tpu.memory_space<vmem>>, vector<8x256xbf16>
    %cst = arith.constant 0.000000e+00 : bf16
    %1 = vector.broadcast %cst : bf16 to vector<8x256xbf16>
    %2 = arith.maximumf %0, %1 : vector<8x256xbf16>
    %c0_1 = arith.constant 0 : index
    %c0_2 = arith.constant 0 : index
    %3 = vector.load %arg5[%c0_1, %c0_2] : memref<1x1408xf32, #tpu.memory_space<vmem>>, vector<1x512xf32>
    %c0_3 = arith.constant 0 : index
    %c512 = arith.constant 512 : index
    %4 = vector.load %arg5[%c0_3, %c512] : memref<1x1408xf32, #tpu.memory_space<vmem>>, vector<1x768xf32>
    %c0_4 = arith.constant 0 : index
    %c1280 = arith.constant 1280 : index
    %5 = vector.load %arg5[%c0_4, %c1280] : memref<1x1408xf32, #tpu.memory_space<vmem>>, vector<1x128xf32>
    %c0_5 = arith.constant 0 : index
    %c0_6 = arith.constant 0 : index
    %6 = vector.load %arg2[%c0_5, %c0_6] : memref<256x512xbf16, #tpu.memory_space<vmem>>, vector<256x512xbf16>
    %cst_7 = arith.constant dense<0.000000e+00> : vector<8x512xf32>
    %7 = tpu.matmul %2, %6, %cst_7 {dimension_numbers = #tpu.dot_dimension_numbers<[1], [0], [0], [1], [0, 0, 1, 1], [], []>} : vector<8x256xbf16>, vector<256x512xbf16>, vector<8x512xf32> -> vector<8x512xf32>
    %8 = vector.broadcast %3 : vector<1x512xf32> to vector<8x512xf32>
    %9 = arith.addf %7, %8 : vector<8x512xf32>
    %cst_8 = arith.constant 0.000000e+00 : f32
    %10 = vector.broadcast %cst_8 : f32 to vector<8x512xf32>
    %11 = arith.maximumf %9, %10 : vector<8x512xf32>
    %12 = arith.truncf %11 : vector<8x512xf32> to vector<8x512xbf16>
    %c0_9 = arith.constant 0 : index
    %c0_10 = arith.constant 0 : index
    %13 = vector.load %arg3[%c0_9, %c0_10] : memref<512x768xbf16, #tpu.memory_space<vmem>>, vector<512x768xbf16>
    %cst_11 = arith.constant dense<0.000000e+00> : vector<8x768xf32>
    %14 = tpu.matmul %12, %13, %cst_11 {dimension_numbers = #tpu.dot_dimension_numbers<[1], [0], [0], [1], [0, 0, 1, 1], [], []>} : vector<8x512xbf16>, vector<512x768xbf16>, vector<8x768xf32> -> vector<8x768xf32>
    %15 = vector.broadcast %4 : vector<1x768xf32> to vector<8x768xf32>
    %16 = arith.addf %14, %15 : vector<8x768xf32>
    %cst_12 = arith.constant 0.000000e+00 : f32
    %17 = vector.broadcast %cst_12 : f32 to vector<8x768xf32>
    %18 = arith.maximumf %16, %17 : vector<8x768xf32>
    %19 = arith.truncf %18 : vector<8x768xf32> to vector<8x768xbf16>
    %c0_13 = arith.constant 0 : index
    %c0_14 = arith.constant 0 : index
    %20 = vector.load %arg4[%c0_13, %c0_14] : memref<768x128xbf16, #tpu.memory_space<vmem>>, vector<768x128xbf16>
    %cst_15 = arith.constant dense<0.000000e+00> : vector<8x128xf32>
    %21 = tpu.matmul %19, %20, %cst_15 {dimension_numbers = #tpu.dot_dimension_numbers<[1], [0], [0], [1], [0, 0, 1, 1], [], []>} : vector<8x768xbf16>, vector<768x128xbf16>, vector<8x128xf32> -> vector<8x128xf32>
    %22 = vector.broadcast %5 : vector<1x128xf32> to vector<8x128xf32>
    %23 = arith.addf %21, %22 : vector<8x128xf32>
    %c0_16 = arith.constant 0 : index
    %c0_17 = arith.constant 0 : index
    %24 = vector.load %arg6[%c0_16, %c0_17] : memref<8x128xf32, #tpu.memory_space<vmem>>, vector<8x128xf32>
    tpu.vector_store %arg6[%c0_16, %c0_17], %23 {strides = array<i32>} : memref<8x128xf32, #tpu.memory_space<vmem>>, vector<8x128xf32>,
    return
  }
  func.func @transform_0(%arg0: i32) -> (i32, i32) {
    %c0_i32 = arith.constant 0 : i32
    %c0_i32_0 = arith.constant 0 : i32
    return %arg0, %c0_i32 : i32, i32
  }
  func.func @transform_1(%arg0: i32) -> (i32, i32) {
    %c0_i32 = arith.constant 0 : i32
    %c0_i32_0 = arith.constant 0 : i32
    %c0_i32_1 = arith.constant 0 : i32
    return %c0_i32, %c0_i32_0 : i32, i32
  }
  func.func @transform_2(%arg0: i32) -> (i32, i32) {
    %c0_i32 = arith.constant 0 : i32
    %c0_i32_0 = arith.constant 0 : i32
    %c0_i32_1 = arith.constant 0 : i32
    return %c0_i32, %c0_i32_0 : i32, i32
  }
  func.func @transform_3(%arg0: i32) -> (i32, i32) {
    %c0_i32 = arith.constant 0 : i32
    %c0_i32_0 = arith.constant 0 : i32
    %c0_i32_1 = arith.constant 0 : i32
    return %c0_i32, %c0_i32_0 : i32, i32
  }
  func.func @transform_4(%arg0: i32) -> (i32, i32) {
    %c0_i32 = arith.constant 0 : i32
    %c0_i32_0 = arith.constant 0 : i32
    %c0_i32_1 = arith.constant 0 : i32
    return %c0_i32, %c0_i32_0 : i32, i32
  }
  func.func @transform_5(%arg0: i32) -> (i32, i32) {
    %c0_i32 = arith.constant 0 : i32
    %c0_i32_0 = arith.constant 0 : i32
    return %arg0, %c0_i32 : i32, i32
  }
}

</mosaic_0001>

<llo_original>
// kernel: tpu_custom_call.1
$region0: #{tpu_custom_call.1}
  #allocation0 [shape = 'u32[]', space=smem, size = 0x4, offset = 0x4, fixed_abs, tag = 'smem constant byte address 0x4 - core index']
  #allocation1 [shape = 'u32[72,128]{1,0:T(1,128)}', space=vmem, size = 0x9000, scoped, tag = 'internal scratch']
  %s0 = inlined_call_operand.hbm [shape: bf16[8,256], index: 0, kind: input, shape index: {}]
  %s1 = inlined_call_operand.hbm [shape: bf16[256,512], index: 1, kind: input, shape index: {}]
  %s2 = inlined_call_operand.hbm [shape: bf16[512,768], index: 2, kind: input, shape index: {}]
  %s3 = inlined_call_operand.hbm [shape: bf16[768,128], index: 3, kind: input, shape index: {}]
  %s4 = inlined_call_operand.hbm [shape: f32[1,1408], index: 4, kind: input, shape index: {}]
  %s5 = inlined_call_operand.hbm [shape: f32[8,128], index: 5, kind: output, shape index: {}]
  %s6 = sld [smem:[#allocation0]]
  $region50: #{tpu_custom_call.1} parent=0
    _
  %s8 = ssub.s32 1, %s6
  %s9 = scalar_select 0, %s8, %s6
  $region1: #{tpu_custom_call.1} parent=0
    #allocation2 [shape = 'u8[4096]{0}', space=vmem, size = 0x1000, scoped, tag = 'input window, operand 0, single buffered']
    #allocation3 [shape = 's32[1]{0}', space=sflag, size = 0x4, scoped, tag = 'scoped memory for tpu_custom_call.1']
    #allocation4 [shape = 's32[1]{0}', space=sflag, size = 0x4, scoped, tag = 'scoped memory for tpu_custom_call.1']
    #allocation5 [shape = 'u8[262144]{0}', space=vmem, size = 0x40000, scoped, tag = 'input window, operand 1, single buffered']
    #allocation6 [shape = 's32[1]{0}', space=sflag, size = 0x4, scoped, tag = 'scoped memory for tpu_custom_call.1']
    #allocation7 [shape = 'u8[786432]{0}', space=vmem, size = 0xc0000, scoped, tag = 'input window, operand 2, single buffered']
    #allocation8 [shape = 'u8[196608]{0}', space=vmem, size = 0x30000, scoped, tag = 'input window, operand 3, single buffered']
    #allocation9 [shape = 's32[1]{0}', space=sflag, size = 0x4, scoped, tag = 'scoped memory for tpu_custom_call.1']
    #allocation10 [shape = 'u8[5632]{0}', space=vmem, size = 0x1800, scoped, tag = 'input window, operand 4, single buffered']
    #allocation11 [shape = 'u8[4096]{0}', space=vmem, size = 0x1000, scoped, tag = 'output window, operand 0, single buffered']
    %10 = vsyncpa [#allocation3], 0
    %11 = vsyncpa [#allocation6], 0
    %12 = vsyncpa [#allocation9], 0
    %13 = vsyncpa [#allocation4], 0
    // Predicated region
    $region2: #{tpu_custom_call.1} parent=1 // pred_check
      _
    $region3: #{tpu_custom_call.1} parent=1 // pred_check_branch
      %15 = sbr.rel (0) target = $region5
    $region4: #{tpu_custom_call.1} parent=1 // pred_region
      %17 = vsyncadd [#allocation3], 0
      %s19 = sshll.u32 %s0, 4
      %s20 = int_to_ptr.hbm [resolvable:$true] %s19
      %s21 = sshll.u32 [#allocation2], 4
      %s22 = int_to_ptr.vmem [resolvable:$true] %s21
      %24 = dma.hbm_to_vmem [thread:$0]  %s20, 128, %s22, [#allocation3]
    $region5: #{tpu_custom_call.1} parent=1 // pred_fallthru
      _
    // Predicated region
    $region6: #{tpu_custom_call.1} parent=1 // pred_check
      _
    $region7: #{tpu_custom_call.1} parent=1 // pred_check_branch
      %26 = sbr.rel (0) target = $region9
    $region8: #{tpu_custom_call.1} parent=1 // pred_region
      %28 = vsyncadd [#allocation6], 0
      %s29 = sshll.u32 %s1, 4
      %s30 = int_to_ptr.hbm [resolvable:$true] %s29
      %s31 = sshll.u32 [#allocation5], 4
      %s32 = int_to_ptr.vmem [resolvable:$true] %s31
      %37 = dma.hbm_to_vmem [thread:$0]  %s30, 8192, %s32, [#allocation6], 256, 256, 16
    $region9: #{tpu_custom_call.1} parent=1 // pred_fallthru
      _
    // Predicated region
    $region10: #{tpu_custom_call.1} parent=1 // pred_check
      _
    $region11: #{tpu_custom_call.1} parent=1 // pred_check_branch
      %39 = sbr.rel (0) target = $region13
    $region12: #{tpu_custom_call.1} parent=1 // pred_region
      %41 = vsyncadd [#allocation6], 0
      %s42 = sshll.u32 %s2, 4
      %s43 = int_to_ptr.hbm [resolvable:$true] %s42
      %s44 = sshll.u32 [#allocation7], 4
      %s45 = int_to_ptr.vmem [resolvable:$true] %s44
      %50 = dma.hbm_to_vmem [thread:$0]  %s43, 24576, %s45, [#allocation6], 384, 384, 24
    $region13: #{tpu_custom_call.1} parent=1 // pred_fallthru
      _
    // Predicated region
    $region14: #{tpu_custom_call.1} parent=1 // pred_check
      _
    $region15: #{tpu_custom_call.1} parent=1 // pred_check_branch
      %52 = sbr.rel (0) target = $region17
    $region16: #{tpu_custom_call.1} parent=1 // pred_region
      %54 = vsyncadd [#allocation9], 0
      %s55 = sshll.u32 %s3, 4
      %s56 = int_to_ptr.hbm [resolvable:$true] %s55
      %s57 = sshll.u32 [#allocation8], 4
      %s58 = int_to_ptr.vmem [resolvable:$true] %s57
      %63 = dma.hbm_to_vmem [thread:$0]  %s56, 6144, %s58, [#allocation9], 64, 64, 4
    $region17: #{tpu_custom_call.1} parent=1 // pred_fallthru
      _
    // Predicated region
    $region18: #{tpu_custom_call.1} parent=1 // pred_check
      _
    $region19: #{tpu_custom_call.1} parent=1 // pred_check_branch
      %65 = sbr.rel (0) target = $region21
    $region20: #{tpu_custom_call.1} parent=1 // pred_region
      %67 = vsyncadd [#allocation9], 0
      %s69 = sshll.u32 %s4, 4
      %s70 = int_to_ptr.hbm [resolvable:$true] %s69
      %s71 = sshll.u32 [#allocation10], 4
      %s72 = int_to_ptr.vmem [resolvable:$true] %s71
      %74 = dma.hbm_to_vmem [thread:$0]  %s70, 176, %s72, [#allocation9]
    $region21: #{tpu_custom_call.1} parent=1 // pred_fallthru
      _
    // Predicated region
    $region22: #{tpu_custom_call.1} parent=1 // pred_check
      _
    $region23: #{tpu_custom_call.1} parent=1 // pred_check_branch
      %76 = sbr.rel (0) target = $region25
    $region24: #{tpu_custom_call.1} parent=1 // pred_region
      %78 = dma.done [#allocation3], 128
    $region25: #{tpu_custom_call.1} parent=1 // pred_fallthru
      _
    // Predicated region
    $region26: #{tpu_custom_call.1} parent=1 // pred_check
      _
    $region27: #{tpu_custom_call.1} parent=1 // pred_check_branch
      %80 = sbr.rel (0) target = $region29
    $region28: #{tpu_custom_call.1} parent=1 // pred_region
      %82 = dma.done [#allocation6], 8192
    $region29: #{tpu_custom_call.1} parent=1 // pred_fallthru
      _
    // Predicated region
    $region30: #{tpu_custom_call.1} parent=1 // pred_check
      _
    $region31: #{tpu_custom_call.1} parent=1 // pred_check_branch
      %84 = sbr.rel (0) target = $region33
    $region32: #{tpu_custom_call.1} parent=1 // pred_region
      %86 = dma.done [#allocation6], 24576
    $region33: #{tpu_custom_call.1} parent=1 // pred_fallthru
      _
    // Predicated region
    $region34: #{tpu_custom_call.1} parent=1 // pred_check
      _
    $region35: #{tpu_custom_call.1} parent=1 // pred_check_branch
      %88 = sbr.rel (0) target = $region37
    $region36: #{tpu_custom_call.1} parent=1 // pred_region
      %90 = dma.done [#allocation9], 6144
    $region37: #{tpu_custom_call.1} parent=1 // pred_fallthru
      _
    // Predicated region
    $region38: #{tpu_custom_call.1} parent=1 // pred_check
      _
    $region39: #{tpu_custom_call.1} parent=1 // pred_check_branch
      %92 = sbr.rel (0) target = $region41
    $region40: #{tpu_custom_call.1} parent=1 // pred_region
      %94 = dma.done [#allocation9], 176
    $region41: #{tpu_custom_call.1} parent=1 // pred_fallthru
      _
    %v95 = vld [vmem:[#allocation2] sm:$0xff]
    %v96 = vunpack.c.l.bf16 %v95
    %v97 = vunpack.c.h.bf16 %v95
    %v98 = vmax.f32 %v96, 0.0
    %v99 = vmax.f32 %v97, 0.0
    %v100 = vpack.c.bf16 %v98, %v98
    %v101 = vpack.c.bf16 %v99, %v99
    %v102 = vld [vmem:[#allocation10] sm:$0xf]
    %v103 = vld [vmem:[#allocation10 + $0x4] sm:$0x3f]
    %v104 = vld [vmem:[#allocation10 + $0xa] sm:$0x1]
    %v105 = vld [vmem:[#allocation5] sm:$0xff]
    %v106 = vld [vmem:[#allocation5 + $0x8] sm:$0xff]
    %v107 = vld [vmem:[#allocation5 + $0x10] sm:$0xff]
    %v108 = vld [vmem:[#allocation5 + $0x18] sm:$0xff]
    %v109 = vld [vmem:[#allocation5 + $0x20] sm:$0xff]
    %v110 = vld [vmem:[#allocation5 + $0x28] sm:$0xff]
    %v111 = vld [vmem:[#allocation5 + $0x30] sm:$0xff]
    %v112 = vld [vmem:[#allocation5 + $0x38] sm:$0xff]
    %v113 = vld [vmem:[#allocation5 + $0x40] sm:$0xff]
    %v114 = vld [vmem:[#allocation5 + $0x48] sm:$0xff]
    %v115 = vld [vmem:[#allocation5 + $0x50] sm:$0xff]
    %v116 = vld [vmem:[#allocation5 + $0x58] sm:$0xff]
    %v117 = vld [vmem:[#allocation5 + $0x60] sm:$0xff]
    %v118 = vld [vmem:[#allocation5 + $0x68] sm:$0xff]
    %v119 = vld [vmem:[#allocation5 + $0x70] sm:$0xff]
    %v120 = vld [vmem:[#allocation5 + $0x78] sm:$0xff]
    %v121 = vld [vmem:[#allocation5 + $0x80] sm:$0xff]
    %v122 = vld [vmem:[#allocation5 + $0x88] sm:$0xff]
    %v123 = vld [vmem:[#allocation5 + $0x90] sm:$0xff]
    %v124 = vld [vmem:[#allocation5 + $0x98] sm:$0xff]
    %v125 = vld [vmem:[#allocation5 + $0xa0] sm:$0xff]
    %v126 = vld [vmem:[#allocation5 + $0xa8] sm:$0xff]
    %v127 = vld [vmem:[#allocation5 + $0xb0] sm:$0xff]
    %v128 = vld [vmem:[#allocation5 + $0xb8] sm:$0xff]
    %v129 = vld [vmem:[#allocation5 + $0xc0] sm:$0xff]
    %v130 = vld [vmem:[#allocation5 + $0xc8] sm:$0xff]
    %v131 = vld [vmem:[#allocation5 + $0xd0] sm:$0xff]
    %v132 = vld [vmem:[#allocation5 + $0xd8] sm:$0xff]
    %v133 = vld [vmem:[#allocation5 + $0xe0] sm:$0xff]
    %v134 = vld [vmem:[#allocation5 + $0xe8] sm:$0xff]
    %v135 = vld [vmem:[#allocation5 + $0xf0] sm:$0xff]
    %v136 = vld [vmem:[#allocation5 + $0xf8] sm:$0xff]
    %v137 = vld [vmem:[#allocation5 + $0x100] sm:$0xff]
    %v138 = vld [vmem:[#allocation5 + $0x108] sm:$0xff]
    %v139 = vld [vmem:[#allocation5 + $0x110] sm:$0xff]
    %v140 = vld [vmem:[#allocation5 + $0x118] sm:$0xff]
    %v141 = vld [vmem:[#allocation5 + $0x120] sm:$0xff]
    %v142 = vld [vmem:[#allocation5 + $0x128] sm:$0xff]
    %v143 = vld [vmem:[#allocation5 + $0x130] sm:$0xff]
    %v144 = vld [vmem:[#allocation5 + $0x138] sm:$0xff]
    %v145 = vld [vmem:[#allocation5 + $0x140] sm:$0xff]
    %v146 = vld [vmem:[#allocation5 + $0x148] sm:$0xff]
    %v147 = vld [vmem:[#allocation5 + $0x150] sm:$0xff]
    %v148 = vld [vmem:[#allocation5 + $0x158] sm:$0xff]
    %v149 = vld [vmem:[#allocation5 + $0x160] sm:$0xff]
    %v150 = vld [vmem:[#allocation5 + $0x168] sm:$0xff]
    %v151 = vld [vmem:[#allocation5 + $0x170] sm:$0xff]
    %v152 = vld [vmem:[#allocation5 + $0x178] sm:$0xff]
    %v153 = vld [vmem:[#allocation5 + $0x180] sm:$0xff]
    %v154 = vld [vmem:[#allocation5 + $0x188] sm:$0xff]
    %v155 = vld [vmem:[#allocation5 + $0x190] sm:$0xff]
    %v156 = vld [vmem:[#allocation5 + $0x198] sm:$0xff]
    %v157 = vld [vmem:[#allocation5 + $0x1a0] sm:$0xff]
    %v158 = vld [vmem:[#allocation5 + $0x1a8] sm:$0xff]
    %v159 = vld [vmem:[#allocation5 + $0x1b0] sm:$0xff]
    %v160 = vld [vmem:[#allocation5 + $0x1b8] sm:$0xff]
    %v161 = vld [vmem:[#allocation5 + $0x1c0] sm:$0xff]
    %v162 = vld [vmem:[#allocation5 + $0x1c8] sm:$0xff]
    %v163 = vld [vmem:[#allocation5 + $0x1d0] sm:$0xff]
    %v164 = vld [vmem:[#allocation5 + $0x1d8] sm:$0xff]
    %v165 = vld [vmem:[#allocation5 + $0x1e0] sm:$0xff]
    %v166 = vld [vmem:[#allocation5 + $0x1e8] sm:$0xff]
    %v167 = vld [vmem:[#allocation5 + $0x1f0] sm:$0xff]
    %v168 = vld [vmem:[#allocation5 + $0x1f8] sm:$0xff]
    %v170 = vperm.slane %v102, 0
    %v171 = vperm.slane %v102, 1
    %v172 = vperm.slane %v102, 2
    %v173 = vperm.slane %v102, 3
    %v242 = vunpack.c.l.b16 %v105
    %v243 = vunpack.c.h.b16 %v105
    %v244 = vunpack.c.l.b16 %v106
    %v245 = vunpack.c.h.b16 %v106
    %v246 = vunpack.c.l.b16 %v107
    %v247 = vunpack.c.h.b16 %v107
    %v248 = vunpack.c.l.b16 %v108
    %v249 = vunpack.c.h.b16 %v108
    %v250 = vunpack.c.l.b16 %v109
    %v251 = vunpack.c.h.b16 %v109
    %v252 = vunpack.c.l.b16 %v110
    %v253 = vunpack.c.h.b16 %v110
    %v254 = vunpack.c.l.b16 %v111
    %v255 = vunpack.c.h.b16 %v111
    %v256 = vunpack.c.l.b16 %v112
    %v257 = vunpack.c.h.b16 %v112
    %v258 = vunpack.c.l.b16 %v113
    %v259 = vunpack.c.h.b16 %v113
    %v260 = vunpack.c.l.b16 %v114
    %v261 = vunpack.c.h.b16 %v114
    %v262 = vunpack.c.l.b16 %v115
    %v263 = vunpack.c.h.b16 %v115
    %v264 = vunpack.c.l.b16 %v116
    %v265 = vunpack.c.h.b16 %v116
    %v266 = vunpack.c.l.b16 %v117
    %v267 = vunpack.c.h.b16 %v117
    %v268 = vunpack.c.l.b16 %v118
    %v269 = vunpack.c.h.b16 %v118
    %v270 = vunpack.c.l.b16 %v119
    %v271 = vunpack.c.h.b16 %v119
    %v272 = vunpack.c.l.b16 %v120
    %v273 = vunpack.c.h.b16 %v120
    %v274 = vunpack.c.l.b16 %v121
    %v275 = vunpack.c.h.b16 %v121
    %v276 = vunpack.c.l.b16 %v122
    %v277 = vunpack.c.h.b16 %v122
    %v278 = vunpack.c.l.b16 %v123
    %v279 = vunpack.c.h.b16 %v123
    %v280 = vunpack.c.l.b16 %v124
    %v281 = vunpack.c.h.b16 %v124
    %v282 = vunpack.c.l.b16 %v125
    %v283 = vunpack.c.h.b16 %v125
    %v284 = vunpack.c.l.b16 %v126
    %v285 = vunpack.c.h.b16 %v126
    %v286 = vunpack.c.l.b16 %v127
    %v287 = vunpack.c.h.b16 %v127
    %v288 = vunpack.c.l.b16 %v128
    %v289 = vunpack.c.h.b16 %v128
    %v290 = vunpack.c.l.b16 %v129
    %v291 = vunpack.c.h.b16 %v129
    %v292 = vunpack.c.l.b16 %v130
    %v293 = vunpack.c.h.b16 %v130
    %v294 = vunpack.c.l.b16 %v131
    %v295 = vunpack.c.h.b16 %v131
    %v296 = vunpack.c.l.b16 %v132
    %v297 = vunpack.c.h.b16 %v132
    %v298 = vunpack.c.l.b16 %v133
    %v299 = vunpack.c.h.b16 %v133
    %v300 = vunpack.c.l.b16 %v134
    %v301 = vunpack.c.h.b16 %v134
    %v302 = vunpack.c.l.b16 %v135
    %v303 = vunpack.c.h.b16 %v135
    %v304 = vunpack.c.l.b16 %v136
    %v305 = vunpack.c.h.b16 %v136
    %v306 = vunpack.c.l.b16 %v137
    %v307 = vunpack.c.h.b16 %v137
    %v308 = vunpack.c.l.b16 %v138
    %v309 = vunpack.c.h.b16 %v138
    %v310 = vunpack.c.l.b16 %v139
    %v311 = vunpack.c.h.b16 %v139
    %v312 = vunpack.c.l.b16 %v140
    %v313 = vunpack.c.h.b16 %v140
    %v314 = vunpack.c.l.b16 %v141
    %v315 = vunpack.c.h.b16 %v141
    %v316 = vunpack.c.l.b16 %v142
    %v317 = vunpack.c.h.b16 %v142
    %v318 = vunpack.c.l.b16 %v143
    %v319 = vunpack.c.h.b16 %v143
    %v320 = vunpack.c.l.b16 %v144
    %v321 = vunpack.c.h.b16 %v144
    %v322 = vunpack.c.l.b16 %v145
    %v323 = vunpack.c.h.b16 %v145
    %v324 = vunpack.c.l.b16 %v146
    %v325 = vunpack.c.h.b16 %v146
    %v326 = vunpack.c.l.b16 %v147
    %v327 = vunpack.c.h.b16 %v147
    %v328 = vunpack.c.l.b16 %v148
    %v329 = vunpack.c.h.b16 %v148
    %v330 = vunpack.c.l.b16 %v149
    %v331 = vunpack.c.h.b16 %v149
    %v332 = vunpack.c.l.b16 %v150
    %v333 = vunpack.c.h.b16 %v150
    %v334 = vunpack.c.l.b16 %v151
    %v335 = vunpack.c.h.b16 %v151
    %v336 = vunpack.c.l.b16 %v152
    %v337 = vunpack.c.h.b16 %v152
    %v338 = vunpack.c.l.b16 %v153
    %v339 = vunpack.c.h.b16 %v153
    %v340 = vunpack.c.l.b16 %v154
    %v341 = vunpack.c.h.b16 %v154
    %v342 = vunpack.c.l.b16 %v155
    %v343 = vunpack.c.h.b16 %v155
    %v344 = vunpack.c.l.b16 %v156
    %v345 = vunpack.c.h.b16 %v156
    %v346 = vunpack.c.l.b16 %v157
    %v347 = vunpack.c.h.b16 %v157
    %v348 = vunpack.c.l.b16 %v158
    %v349 = vunpack.c.h.b16 %v158
    %v350 = vunpack.c.l.b16 %v159
    %v351 = vunpack.c.h.b16 %v159
    %v352 = vunpack.c.l.b16 %v160
    %v353 = vunpack.c.h.b16 %v160
    %v354 = vunpack.c.l.b16 %v161
    %v355 = vunpack.c.h.b16 %v161
    %v356 = vunpack.c.l.b16 %v162
    %v357 = vunpack.c.h.b16 %v162
    %v358 = vunpack.c.l.b16 %v163
    %v359 = vunpack.c.h.b16 %v163
    %v360 = vunpack.c.l.b16 %v164
    %v361 = vunpack.c.h.b16 %v164
    %v362 = vunpack.c.l.b16 %v165
    %v363 = vunpack.c.h.b16 %v165
    %v364 = vunpack.c.l.b16 %v166
    %v365 = vunpack.c.h.b16 %v166
    %v366 = vunpack.c.l.b16 %v167
    %v367 = vunpack.c.h.b16 %v167
    %v368 = vunpack.c.l.b16 %v168
    %v369 = vunpack.c.h.b16 %v168
    %v370 = vpack.c.b16 %v246, %v242
    %v371 = vpack.c.b16 %v247, %v243
    %v372 = vpack.c.b16 %v248, %v244
    %v373 = vpack.c.b16 %v249, %v245
    %v374 = vpack.c.b16 %v254, %v250
    %v375 = vpack.c.b16 %v255, %v251
    %v376 = vpack.c.b16 %v256, %v252
    %v377 = vpack.c.b16 %v257, %v253
    %v378 = vpack.c.b16 %v262, %v258
    %v379 = vpack.c.b16 %v263, %v259
    %v380 = vpack.c.b16 %v264, %v260
    %v381 = vpack.c.b16 %v265, %v261
    %v382 = vpack.c.b16 %v270, %v266
    %v383 = vpack.c.b16 %v271, %v267
    %v384 = vpack.c.b16 %v272, %v268
    %v385 = vpack.c.b16 %v273, %v269
    %v386 = vpack.c.b16 %v278, %v274
    %v387 = vpack.c.b16 %v279, %v275
    %v388 = vpack.c.b16 %v280, %v276
    %v389 = vpack.c.b16 %v281, %v277
    %v390 = vpack.c.b16 %v286, %v282
    %v391 = vpack.c.b16 %v287, %v283
    %v392 = vpack.c.b16 %v288, %v284
    %v393 = vpack.c.b16 %v289, %v285
    %v394 = vpack.c.b16 %v294, %v290
    %v395 = vpack.c.b16 %v295, %v291
    %v396 = vpack.c.b16 %v296, %v292
    %v397 = vpack.c.b16 %v297, %v293
    %v398 = vpack.c.b16 %v302, %v298
    %v399 = vpack.c.b16 %v303, %v299
    %v400 = vpack.c.b16 %v304, %v300
    %v401 = vpack.c.b16 %v305, %v301
    %v402 = vpack.c.b16 %v310, %v306
    %v403 = vpack.c.b16 %v311, %v307
    %v404 = vpack.c.b16 %v312, %v308
    %v405 = vpack.c.b16 %v313, %v309
    %v406 = vpack.c.b16 %v318, %v314
    %v407 = vpack.c.b16 %v319, %v315
    %v408 = vpack.c.b16 %v320, %v316
    %v409 = vpack.c.b16 %v321, %v317
    %v410 = vpack.c.b16 %v326, %v322
    %v411 = vpack.c.b16 %v327, %v323
    %v412 = vpack.c.b16 %v328, %v324
    %v413 = vpack.c.b16 %v329, %v325
    %v414 = vpack.c.b16 %v334, %v330
    %v415 = vpack.c.b16 %v335, %v331
    %v416 = vpack.c.b16 %v336, %v332
    %v417 = vpack.c.b16 %v337, %v333
    %v418 = vpack.c.b16 %v342, %v338
    %v419 = vpack.c.b16 %v343, %v339
    %v420 = vpack.c.b16 %v344, %v340
    %v421 = vpack.c.b16 %v345, %v341
    %v422 = vpack.c.b16 %v350, %v346
    %v423 = vpack.c.b16 %v351, %v347
    %v424 = vpack.c.b16 %v352, %v348
    %v425 = vpack.c.b16 %v353, %v349
    %v426 = vpack.c.b16 %v358, %v354
    %v427 = vpack.c.b16 %v359, %v355
    %v428 = vpack.c.b16 %v360, %v356
    %v429 = vpack.c.b16 %v361, %v357
    %v430 = vpack.c.b16 %v366, %v362
    %v431 = vpack.c.b16 %v367, %v363
    %v432 = vpack.c.b16 %v368, %v364
    %v433 = vpack.c.b16 %v369, %v365
    %498 = vmatpush.bf16.msra.mxu0 %v398
    %499 = vmatpush.bf16.msra.mxu0 %v394
    %500 = vmatpush.bf16.msra.mxu0 %v390
    %501 = vmatpush.bf16.msra.mxu0 %v386
    %502 = vmatpush.bf16.msra.mxu0 %v382
    %503 = vmatpush.bf16.msra.mxu0 %v378
    %504 = vmatpush.bf16.msra.mxu0 %v374
    %505 = vmatpush.bf16.msra.mxu0 %v370
    %506 = vmatmul.bf16.gmra.mxu0 %v100
    %v507 = vpop.f32.mrf.mxu0
    %v508 = vadd.f32 %v170, %v507
    %v509 = vpop.f32.mrf.mxu0
    %510 = vdwg.mxu0
    %511 = vmatpush.bf16.msra.mxu0 %v430
    %512 = vmatpush.bf16.msra.mxu0 %v426
    %513 = vmatpush.bf16.msra.mxu0 %v422
    %514 = vmatpush.bf16.msra.mxu0 %v418
    %515 = vmatpush.bf16.msra.mxu0 %v414
    %516 = vmatpush.bf16.msra.mxu0 %v410
    %517 = vmatpush.bf16.msra.mxu0 %v406
    %518 = vmatpush.bf16.msra.mxu0 %v402
    %519 = vmatmul.bf16.gmra.mxu0 %v101
    %v520 = vpop.f32.mrf.mxu0
    %v521 = vadd.f32 %v508, %v520
    %v522 = vpop.f32.mrf.mxu0
    %523 = vdwg.mxu0
    %524 = vmatpush.bf16.msra.mxu0 %v399
    %525 = vmatpush.bf16.msra.mxu0 %v395
    %526 = vmatpush.bf16.msra.mxu0 %v391
    %527 = vmatpush.bf16.msra.mxu0 %v387
    %528 = vmatpush.bf16.msra.mxu0 %v383
    %529 = vmatpush.bf16.msra.mxu0 %v379
    %530 = vmatpush.bf16.msra.mxu0 %v375
    %531 = vmatpush.bf16.msra.mxu0 %v371
    %532 = vmatmul.bf16.gmra.mxu0 %v100
    %v533 = vpop.f32.mrf.mxu0
    %v534 = vadd.f32 %v171, %v533
    %v535 = vpop.f32.mrf.mxu0
    %536 = vdwg.mxu0
    %537 = vmatpush.bf16.msra.mxu0 %v431
    %538 = vmatpush.bf16.msra.mxu0 %v427
    %539 = vmatpush.bf16.msra.mxu0 %v423
    %540 = vmatpush.bf16.msra.mxu0 %v419
    %541 = vmatpush.bf16.msra.mxu0 %v415
    %542 = vmatpush.bf16.msra.mxu0 %v411
    %543 = vmatpush.bf16.msra.mxu0 %v407
    %544 = vmatpush.bf16.msra.mxu0 %v403
    %545 = vmatmul.bf16.gmra.mxu0 %v101
    %v546 = vpop.f32.mrf.mxu0
    %v547 = vadd.f32 %v534, %v546
    %v548 = vpop.f32.mrf.mxu0
    %549 = vdwg.mxu0
    %550 = vmatpush.bf16.msra.mxu0 %v400
    %551 = vmatpush.bf16.msra.mxu0 %v396
    %552 = vmatpush.bf16.msra.mxu0 %v392
    %553 = vmatpush.bf16.msra.mxu0 %v388
    %554 = vmatpush.bf16.msra.mxu0 %v384
    %555 = vmatpush.bf16.msra.mxu0 %v380
    %556 = vmatpush.bf16.msra.mxu0 %v376
    %557 = vmatpush.bf16.msra.mxu0 %v372
    %558 = vmatmul.bf16.gmra.mxu0 %v100
    %v559 = vpop.f32.mrf.mxu0
    %v560 = vadd.f32 %v172, %v559
    %v561 = vpop.f32.mrf.mxu0
    %562 = vdwg.mxu0
    %563 = vmatpush.bf16.msra.mxu0 %v432
    %564 = vmatpush.bf16.msra.mxu0 %v428
    %565 = vmatpush.bf16.msra.mxu0 %v424
    %566 = vmatpush.bf16.msra.mxu0 %v420
    %567 = vmatpush.bf16.msra.mxu0 %v416
    %568 = vmatpush.bf16.msra.mxu0 %v412
    %569 = vmatpush.bf16.msra.mxu0 %v408
    %570 = vmatpush.bf16.msra.mxu0 %v404
    %571 = vmatmul.bf16.gmra.mxu0 %v101
    %v572 = vpop.f32.mrf.mxu0
    %v573 = vadd.f32 %v560, %v572
    %v574 = vpop.f32.mrf.mxu0
    %575 = vdwg.mxu0
    %576 = vmatpush.bf16.msra.mxu0 %v401
    %577 = vmatpush.bf16.msra.mxu0 %v397
    %578 = vmatpush.bf16.msra.mxu0 %v393
    %579 = vmatpush.bf16.msra.mxu0 %v389
    %580 = vmatpush.bf16.msra.mxu0 %v385
    %581 = vmatpush.bf16.msra.mxu0 %v381
    %582 = vmatpush.bf16.msra.mxu0 %v377
    %583 = vmatpush.bf16.msra.mxu0 %v373
    %584 = vmatmul.bf16.gmra.mxu0 %v100
    %v585 = vpop.f32.mrf.mxu0
    %v586 = vadd.f32 %v173, %v585
    %v587 = vpop.f32.mrf.mxu0
    %588 = vdwg.mxu0
    %589 = vmatpush.bf16.msra.mxu0 %v433
    %590 = vmatpush.bf16.msra.mxu0 %v429
    %591 = vmatpush.bf16.msra.mxu0 %v425
    %592 = vmatpush.bf16.msra.mxu0 %v421
    %593 = vmatpush.bf16.msra.mxu0 %v417
    %594 = vmatpush.bf16.msra.mxu0 %v413
    %595 = vmatpush.bf16.msra.mxu0 %v409
    %596 = vmatpush.bf16.msra.mxu0 %v405
    %597 = vmatmul.bf16.gmra.mxu0 %v101
    %v598 = vpop.f32.mrf.mxu0
    %v599 = vadd.f32 %v586, %v598
    %v600 = vpop.f32.mrf.mxu0
    %601 = vdwg.mxu0
    %v602 = vmax.f32 %v521, 0.0
    %v603 = vmax.f32 %v547, 0.0
    %v604 = vmax.f32 %v573, 0.0
    %v605 = vmax.f32 %v599, 0.0
    %v606 = vpack.c.bf16 %v602, %v602
    %v607 = vpack.c.bf16 %v603, %v603
    %v608 = vpack.c.bf16 %v604, %v604
    %v609 = vpack.c.bf16 %v605, %v605
    %v610 = vld [vmem:[#allocation7] sm:$0xff]
    %v611 = vld [vmem:[#allocation7 + $0x8] sm:$0xff]
    %v612 = vld [vmem:[#allocation7 + $0x10] sm:$0xff]
    %v613 = vld [vmem:[#allocation7 + $0x18] sm:$0xff]
    %v614 = vld [vmem:[#allocation7 + $0x20] sm:$0xff]
    %v615 = vld [vmem:[#allocation7 + $0x28] sm:$0xff]
    %v616 = vld [vmem:[#allocation7 + $0x30] sm:$0xff]
    %v617 = vld [vmem:[#allocation7 + $0x38] sm:$0xff]
    %v618 = vld [vmem:[#allocation7 + $0x40] sm:$0xff]
    %v619 = vld [vmem:[#allocation7 + $0x48] sm:$0xff]
    %v620 = vld [vmem:[#allocation7 + $0x50] sm:$0xff]
    %v621 = vld [vmem:[#allocation7 + $0x58] sm:$0xff]
    %v622 = vld [vmem:[#allocation7 + $0x60] sm:$0xff]
    %v623 = vld [vmem:[#allocation7 + $0x68] sm:$0xff]
    %v624 = vld [vmem:[#allocation7 + $0x70] sm:$0xff]
    %v625 = vld [vmem:[#allocation7 + $0x78] sm:$0xff]
    %v626 = vld [vmem:[#allocation7 + $0x80] sm:$0xff]
    %v627 = vld [vmem:[#allocation7 + $0x88] sm:$0xff]
    %v628 = vld [vmem:[#allocation7 + $0x90] sm:$0xff]
    %v629 = vld [vmem:[#allocation7 + $0x98] sm:$0xff]
    %v630 = vld [vmem:[#allocation7 + $0xa0] sm:$0xff]
    %v631 = vld [vmem:[#allocation7 + $0xa8] sm:$0xff]
    %v632 = vld [vmem:[#allocation7 + $0xb0] sm:$0xff]
    %v633 = vld [vmem:[#allocation7 + $0xb8] sm:$0xff]
    %v634 = vld [vmem:[#allocation7 + $0xc0] sm:$0xff]
    %v635 = vld [vmem:[#allocation7 + $0xc8] sm:$0xff]
    %v636 = vld [vmem:[#allocation7 + $0xd0] sm:$0xff]
    %v637 = vld [vmem:[#allocation7 + $0xd8] sm:$0xff]
    %v638 = vld [vmem:[#allocation7 + $0xe0] sm:$0xff]
    %v639 = vld [vmem:[#allocation7 + $0xe8] sm:$0xff]
    %v640 = vld [vmem:[#allocation7 + $0xf0] sm:$0xff]
    %v641 = vld [vmem:[#allocation7 + $0xf8] sm:$0xff]
    %v642 = vld [vmem:[#allocation7 + $0x100] sm:$0xff]
    %v643 = vld [vmem:[#allocation7 + $0x108] sm:$0xff]
    %v644 = vld [vmem:[#allocation7 + $0x110] sm:$0xff]
    %v645 = vld [vmem:[#allocation7 + $0x118] sm:$0xff]
    %v646 = vld [vmem:[#allocation7 + $0x120] sm:$0xff]
    %v647 = vld [vmem:[#allocation7 + $0x128] sm:$0xff]
    %v648 = vld [vmem:[#allocation7 + $0x130] sm:$0xff]
    %v649 = vld [vmem:[#allocation7 + $0x138] sm:$0xff]
    %v650 = vld [vmem:[#allocation7 + $0x140] sm:$0xff]
    %v651 = vld [vmem:[#allocation7 + $0x148] sm:$0xff]
    %v652 = vld [vmem:[#allocation7 + $0x150] sm:$0xff]
    %v653 = vld [vmem:[#allocation7 + $0x158] sm:$0xff]
    %v654 = vld [vmem:[#allocation7 + $0x160] sm:$0xff]
    %v655 = vld [vmem:[#allocation7 + $0x168] sm:$0xff]
    %v656 = vld [vmem:[#allocation7 + $0x170] sm:$0xff]
    %v657 = vld [vmem:[#allocation7 + $0x178] sm:$0xff]
    %v658 = vld [vmem:[#allocation7 + $0x180] sm:$0xff]
    %v659 = vld [vmem:[#allocation7 + $0x188] sm:$0xff]
    %v660 = vld [vmem:[#allocation7 + $0x190] sm:$0xff]
    %v661 = vld [vmem:[#allocation7 + $0x198] sm:$0xff]
    %v662 = vld [vmem:[#allocation7 + $0x1a0] sm:$0xff]
    %v663 = vld [vmem:[#allocation7 + $0x1a8] sm:$0xff]
    %v664 = vld [vmem:[#allocation7 + $0x1b0] sm:$0xff]
    %v665 = vld [vmem:[#allocation7 + $0x1b8] sm:$0xff]
    %v666 = vld [vmem:[#allocation7 + $0x1c0] sm:$0xff]
    %v667 = vld [vmem:[#allocation7 + $0x1c8] sm:$0xff]
    %v668 = vld [vmem:[#allocation7 + $0x1d0] sm:$0xff]
    %v669 = vld [vmem:[#allocation7 + $0x1d8] sm:$0xff]
    %v670 = vld [vmem:[#allocation7 + $0x1e0] sm:$0xff]
    %v671 = vld [vmem:[#allocation7 + $0x1e8] sm:$0xff]
    %v672 = vld [vmem:[#allocation7 + $0x1f0] sm:$0xff]
    %v673 = vld [vmem:[#allocation7 + $0x1f8] sm:$0xff]
    %v674 = vld [vmem:[#allocation7 + $0x200] sm:$0xff]
    %v675 = vld [vmem:[#allocation7 + $0x208] sm:$0xff]
    %v676 = vld [vmem:[#allocation7 + $0x210] sm:$0xff]
    %v677 = vld [vmem:[#allocation7 + $0x218] sm:$0xff]
    %v678 = vld [vmem:[#allocation7 + $0x220] sm:$0xff]
    %v679 = vld [vmem:[#allocation7 + $0x228] sm:$0xff]
    %v680 = vld [vmem:[#allocation7 + $0x230] sm:$0xff]
    %v681 = vld [vmem:[#allocation7 + $0x238] sm:$0xff]
    %v682 = vld [vmem:[#allocation7 + $0x240] sm:$0xff]
    %v683 = vld [vmem:[#allocation7 + $0x248] sm:$0xff]
    %v684 = vld [vmem:[#allocation7 + $0x250] sm:$0xff]
    %v685 = vld [vmem:[#allocation7 + $0x258] sm:$0xff]
    %v686 = vld [vmem:[#allocation7 + $0x260] sm:$0xff]
    %v687 = vld [vmem:[#allocation7 + $0x268] sm:$0xff]
    %v688 = vld [vmem:[#allocation7 + $0x270] sm:$0xff]
    %v689 = vld [vmem:[#allocation7 + $0x278] sm:$0xff]
    %v690 = vld [vmem:[#allocation7 + $0x280] sm:$0xff]
    %v691 = vld [vmem:[#allocation7 + $0x288] sm:$0xff]
    %v692 = vld [vmem:[#allocation7 + $0x290] sm:$0xff]
    %v693 = vld [vmem:[#allocation7 + $0x298] sm:$0xff]
    %v694 = vld [vmem:[#allocation7 + $0x2a0] sm:$0xff]
    %v695 = vld [vmem:[#allocation7 + $0x2a8] sm:$0xff]
    %v696 = vld [vmem:[#allocation7 + $0x2b0] sm:$0xff]
    %v697 = vld [vmem:[#allocation7 + $0x2b8] sm:$0xff]
    %v698 = vld [vmem:[#allocation7 + $0x2c0] sm:$0xff]
    %v699 = vld [vmem:[#allocation7 + $0x2c8] sm:$0xff]
    %v700 = vld [vmem:[#allocation7 + $0x2d0] sm:$0xff]
    %v701 = vld [vmem:[#allocation7 + $0x2d8] sm:$0xff]
    %v702 = vld [vmem:[#allocation7 + $0x2e0] sm:$0xff]
    %v703 = vld [vmem:[#allocation7 + $0x2e8] sm:$0xff]
    %v704 = vld [vmem:[#allocation7 + $0x2f0] sm:$0xff]
    %v705 = vld [vmem:[#allocation7 + $0x2f8] sm:$0xff]
    %v706 = vld [vmem:[#allocation7 + $0x300] sm:$0xff]
    %v707 = vld [vmem:[#allocation7 + $0x308] sm:$0xff]
    %v708 = vld [vmem:[#allocation7 + $0x310] sm:$0xff]
    %v709 = vld [vmem:[#allocation7 + $0x318] sm:$0xff]
    %v710 = vld [vmem:[#allocation7 + $0x320] sm:$0xff]
    %v711 = vld [vmem:[#allocation7 + $0x328] sm:$0xff]
    %v712 = vld [vmem:[#allocation7 + $0x330] sm:$0xff]
    %v713 = vld [vmem:[#allocation7 + $0x338] sm:$0xff]
    %v714 = vld [vmem:[#allocation7 + $0x340] sm:$0xff]
    %v715 = vld [vmem:[#allocation7 + $0x348] sm:$0xff]
    %v716 = vld [vmem:[#allocation7 + $0x350] sm:$0xff]
    %v717 = vld [vmem:[#allocation7 + $0x358] sm:$0xff]
    %v718 = vld [vmem:[#allocation7 + $0x360] sm:$0xff]
    %v719 = vld [vmem:[#allocation7 + $0x368] sm:$0xff]
    %v720 = vld [vmem:[#allocation7 + $0x370] sm:$0xff]
    %v721 = vld [vmem:[#allocation7 + $0x378] sm:$0xff]
    %v722 = vld [vmem:[#allocation7 + $0x380] sm:$0xff]
    %v723 = vld [vmem:[#allocation7 + $0x388] sm:$0xff]
    %v724 = vld [vmem:[#allocation7 + $0x390] sm:$0xff]
    %v725 = vld [vmem:[#allocation7 + $0x398] sm:$0xff]
    %v726 = vld [vmem:[#allocation7 + $0x3a0] sm:$0xff]
    %v727 = vld [vmem:[#allocation7 + $0x3a8] sm:$0xff]
    %v728 = vld [vmem:[#allocation7 + $0x3b0] sm:$0xff]
    %v729 = vld [vmem:[#allocation7 + $0x3b8] sm:$0xff]
    %v730 = vld [vmem:[#allocation7 + $0x3c0] sm:$0xff]
    %v731 = vld [vmem:[#allocation7 + $0x3c8] sm:$0xff]
    %v732 = vld [vmem:[#allocation7 + $0x3d0] sm:$0xff]
    %v733 = vld [vmem:[#allocation7 + $0x3d8] sm:$0xff]
    %v734 = vld [vmem:[#allocation7 + $0x3e0] sm:$0xff]
    %v735 = vld [vmem:[#allocation7 + $0x3e8] sm:$0xff]
    %v736 = vld [vmem:[#allocation7 + $0x3f0] sm:$0xff]
    %v737 = vld [vmem:[#allocation7 + $0x3f8] sm:$0xff]
    %v738 = vld [vmem:[#allocation7 + $0x400] sm:$0xff]
    %v739 = vld [vmem:[#allocation7 + $0x408] sm:$0xff]
    %v740 = vld [vmem:[#allocation7 + $0x410] sm:$0xff]
    %v741 = vld [vmem:[#allocation7 + $0x418] sm:$0xff]
    %v742 = vld [vmem:[#allocation7 + $0x420] sm:$0xff]
    %v743 = vld [vmem:[#allocation7 + $0x428] sm:$0xff]
    %v744 = vld [vmem:[#allocation7 + $0x430] sm:$0xff]
    %v745 = vld [vmem:[#allocation7 + $0x438] sm:$0xff]
    %v746 = vld [vmem:[#allocation7 + $0x440] sm:$0xff]
    %v747 = vld [vmem:[#allocation7 + $0x448] sm:$0xff]
    %v748 = vld [vmem:[#allocation7 + $0x450] sm:$0xff]
    %v749 = vld [vmem:[#allocation7 + $0x458] sm:$0xff]
    %v750 = vld [vmem:[#allocation7 + $0x460] sm:$0xff]
    %v751 = vld [vmem:[#allocation7 + $0x468] sm:$0xff]
    %v752 = vld [vmem:[#allocation7 + $0x470] sm:$0xff]
    %v753 = vld [vmem:[#allocation7 + $0x478] sm:$0xff]
    %v754 = vld [vmem:[#allocation7 + $0x480] sm:$0xff]
    %v755 = vld [vmem:[#allocation7 + $0x488] sm:$0xff]
    %v756 = vld [vmem:[#allocation7 + $0x490] sm:$0xff]
    %v757 = vld [vmem:[#allocation7 + $0x498] sm:$0xff]
    %v758 = vld [vmem:[#allocation7 + $0x4a0] sm:$0xff]
    %v759 = vld [vmem:[#allocation7 + $0x4a8] sm:$0xff]
    %v760 = vld [vmem:[#allocation7 + $0x4b0] sm:$0xff]
    %v761 = vld [vmem:[#allocation7 + $0x4b8] sm:$0xff]
    %v762 = vld [vmem:[#allocation7 + $0x4c0] sm:$0xff]
    %v763 = vld [vmem:[#allocation7 + $0x4c8] sm:$0xff]
    %v764 = vld [vmem:[#allocation7 + $0x4d0] sm:$0xff]
    %v765 = vld [vmem:[#allocation7 + $0x4d8] sm:$0xff]
    %v766 = vld [vmem:[#allocation7 + $0x4e0] sm:$0xff]
    %v767 = vld [vmem:[#allocation7 + $0x4e8] sm:$0xff]
    %v768 = vld [vmem:[#allocation7 + $0x4f0] sm:$0xff]
    %v769 = vld [vmem:[#allocation7 + $0x4f8] sm:$0xff]
    %v770 = vld [vmem:[#allocation7 + $0x500] sm:$0xff]
    %v771 = vld [vmem:[#allocation7 + $0x508] sm:$0xff]
    %v772 = vld [vmem:[#allocation7 + $0x510] sm:$0xff]
    %v773 = vld [vmem:[#allocation7 + $0x518] sm:$0xff]
    %v774 = vld [vmem:[#allocation7 + $0x520] sm:$0xff]
    %v775 = vld [vmem:[#allocation7 + $0x528] sm:$0xff]
    %v776 = vld [vmem:[#allocation7 + $0x530] sm:$0xff]
    %v777 = vld [vmem:[#allocation7 + $0x538] sm:$0xff]
    %v778 = vld [vmem:[#allocation7 + $0x540] sm:$0xff]
    %v779 = vld [vmem:[#allocation7 + $0x548] sm:$0xff]
    %v780 = vld [vmem:[#allocation7 + $0x550] sm:$0xff]
    %v781 = vld [vmem:[#allocation7 + $0x558] sm:$0xff]
    %v782 = vld [vmem:[#allocation7 + $0x560] sm:$0xff]
    %v783 = vld [vmem:[#allocation7 + $0x568] sm:$0xff]
    %v784 = vld [vmem:[#allocation7 + $0x570] sm:$0xff]
    %v785 = vld [vmem:[#allocation7 + $0x578] sm:$0xff]
    %v786 = vld [vmem:[#allocation7 + $0x580] sm:$0xff]
    %v787 = vld [vmem:[#allocation7 + $0x588] sm:$0xff]
    %v788 = vld [vmem:[#allocation7 + $0x590] sm:$0xff]
    %v789 = vld [vmem:[#allocation7 + $0x598] sm:$0xff]
    %v790 = vld [vmem:[#allocation7 + $0x5a0] sm:$0xff]
    %v791 = vld [vmem:[#allocation7 + $0x5a8] sm:$0xff]
    %v792 = vld [vmem:[#allocation7 + $0x5b0] sm:$0xff]
    %v793 = vld [vmem:[#allocation7 + $0x5b8] sm:$0xff]
    %v794 = vld [vmem:[#allocation7 + $0x5c0] sm:$0xff]
    %v795 = vld [vmem:[#allocation7 + $0x5c8] sm:$0xff]
    %v796 = vld [vmem:[#allocation7 + $0x5d0] sm:$0xff]
    %v797 = vld [vmem:[#allocation7 + $0x5d8] sm:$0xff]
    %v798 = vld [vmem:[#allocation7 + $0x5e0] sm:$0xff]
    %v799 = vld [vmem:[#allocation7 + $0x5e8] sm:$0xff]
    %v800 = vld [vmem:[#allocation7 + $0x5f0] sm:$0xff]
    %v801 = vld [vmem:[#allocation7 + $0x5f8] sm:$0xff]
    %v803 = vperm.slane %v103, 0
    %v804 = vperm.slane %v103, 1
    %v805 = vperm.slane %v103, 2
    %v806 = vperm.slane %v103, 3
    %v807 = vperm.slane %v103, 4
    %v808 = vperm.slane %v103, 5
    %v1007 = vunpack.c.l.b16 %v610
    %v1008 = vunpack.c.h.b16 %v610
    %v1009 = vunpack.c.l.b16 %v611
    %v1010 = vunpack.c.h.b16 %v611
    %v1011 = vunpack.c.l.b16 %v612
    %v1012 = vunpack.c.h.b16 %v612
    %v1013 = vunpack.c.l.b16 %v613
    %v1014 = vunpack.c.h.b16 %v613
    %v1015 = vunpack.c.l.b16 %v614
    %v1016 = vunpack.c.h.b16 %v614
    %v1017 = vunpack.c.l.b16 %v615
    %v1018 = vunpack.c.h.b16 %v615
    %v1019 = vunpack.c.l.b16 %v616
    %v1020 = vunpack.c.h.b16 %v616
    %v1021 = vunpack.c.l.b16 %v617
    %v1022 = vunpack.c.h.b16 %v617
    %v1023 = vunpack.c.l.b16 %v618
    %v1024 = vunpack.c.h.b16 %v618
    %v1025 = vunpack.c.l.b16 %v619
    %v1026 = vunpack.c.h.b16 %v619
    %v1027 = vunpack.c.l.b16 %v620
    %v1028 = vunpack.c.h.b16 %v620
    %v1029 = vunpack.c.l.b16 %v621
    %v1030 = vunpack.c.h.b16 %v621
    %v1031 = vunpack.c.l.b16 %v622
    %v1032 = vunpack.c.h.b16 %v622
    %v1033 = vunpack.c.l.b16 %v623
    %v1034 = vunpack.c.h.b16 %v623
    %v1035 = vunpack.c.l.b16 %v624
    %v1036 = vunpack.c.h.b16 %v624
    %v1037 = vunpack.c.l.b16 %v625
    %v1038 = vunpack.c.h.b16 %v625
    %v1039 = vunpack.c.l.b16 %v626
    %v1040 = vunpack.c.h.b16 %v626
    %v1041 = vunpack.c.l.b16 %v627
    %v1042 = vunpack.c.h.b16 %v627
    %v1043 = vunpack.c.l.b16 %v628
    %v1044 = vunpack.c.h.b16 %v628
    %v1045 = vunpack.c.l.b16 %v629
    %v1046 = vunpack.c.h.b16 %v629
    %v1047 = vunpack.c.l.b16 %v630
    %v1048 = vunpack.c.h.b16 %v630
    %v1049 = vunpack.c.l.b16 %v631
    %v1050 = vunpack.c.h.b16 %v631
    %v1051 = vunpack.c.l.b16 %v632
    %v1052 = vunpack.c.h.b16 %v632
    %v1053 = vunpack.c.l.b16 %v633
    %v1054 = vunpack.c.h.b16 %v633
    %v1055 = vunpack.c.l.b16 %v634
    %v1056 = vunpack.c.h.b16 %v634
    %v1057 = vunpack.c.l.b16 %v635
    %v1058 = vunpack.c.h.b16 %v635
    %v1059 = vunpack.c.l.b16 %v636
    %v1060 = vunpack.c.h.b16 %v636
    %v1061 = vunpack.c.l.b16 %v637
    %v1062 = vunpack.c.h.b16 %v637
    %v1063 = vunpack.c.l.b16 %v638
    %v1064 = vunpack.c.h.b16 %v638
    %v1065 = vunpack.c.l.b16 %v639
    %v1066 = vunpack.c.h.b16 %v639
    %v1067 = vunpack.c.l.b16 %v640
    %v1068 = vunpack.c.h.b16 %v640
    %v1069 = vunpack.c.l.b16 %v641
    %v1070 = vunpack.c.h.b16 %v641
    %v1071 = vunpack.c.l.b16 %v642
    %v1072 = vunpack.c.h.b16 %v642
    %v1073 = vunpack.c.l.b16 %v643
    %v1074 = vunpack.c.h.b16 %v643
    %v1075 = vunpack.c.l.b16 %v644
    %v1076 = vunpack.c.h.b16 %v644
    %v1077 = vunpack.c.l.b16 %v645
    %v1078 = vunpack.c.h.b16 %v645
    %v1079 = vunpack.c.l.b16 %v646
    %v1080 = vunpack.c.h.b16 %v646
    %v1081 = vunpack.c.l.b16 %v647
    %v1082 = vunpack.c.h.b16 %v647
    %v1083 = vunpack.c.l.b16 %v648
    %v1084 = vunpack.c.h.b16 %v648
    %v1085 = vunpack.c.l.b16 %v649
    %v1086 = vunpack.c.h.b16 %v649
    %v1087 = vunpack.c.l.b16 %v650
    %v1088 = vunpack.c.h.b16 %v650
    %v1089 = vunpack.c.l.b16 %v651
    %v1090 = vunpack.c.h.b16 %v651
    %v1091 = vunpack.c.l.b16 %v652
    %v1092 = vunpack.c.h.b16 %v652
    %v1093 = vunpack.c.l.b16 %v653
    %v1094 = vunpack.c.h.b16 %v653
    %v1095 = vunpack.c.l.b16 %v654
    %v1096 = vunpack.c.h.b16 %v654
    %v1097 = vunpack.c.l.b16 %v655
    %v1098 = vunpack.c.h.b16 %v655
    %v1099 = vunpack.c.l.b16 %v656
    %v1100 = vunpack.c.h.b16 %v656
    %v1101 = vunpack.c.l.b16 %v657
    %v1102 = vunpack.c.h.b16 %v657
    %v1103 = vunpack.c.l.b16 %v658
    %v1104 = vunpack.c.h.b16 %v658
    %v1105 = vunpack.c.l.b16 %v659
    %v1106 = vunpack.c.h.b16 %v659
    %v1107 = vunpack.c.l.b16 %v660
    %v1108 = vunpack.c.h.b16 %v660
    %v1109 = vunpack.c.l.b16 %v661
    %v1110 = vunpack.c.h.b16 %v661
    %v1111 = vunpack.c.l.b16 %v662
    %v1112 = vunpack.c.h.b16 %v662
    %v1113 = vunpack.c.l.b16 %v663
    %v1114 = vunpack.c.h.b16 %v663
    %v1115 = vunpack.c.l.b16 %v664
    %v1116 = vunpack.c.h.b16 %v664
    %v1117 = vunpack.c.l.b16 %v665
    %v1118 = vunpack.c.h.b16 %v665
    %v1119 = vunpack.c.l.b16 %v666
    %v1120 = vunpack.c.h.b16 %v666
    %v1121 = vunpack.c.l.b16 %v667
    %v1122 = vunpack.c.h.b16 %v667
    %v1123 = vunpack.c.l.b16 %v668
    %v1124 = vunpack.c.h.b16 %v668
    %v1125 = vunpack.c.l.b16 %v669
    %v1126 = vunpack.c.h.b16 %v669
    %v1127 = vunpack.c.l.b16 %v670
    %v1128 = vunpack.c.h.b16 %v670
    %v1129 = vunpack.c.l.b16 %v671
    %v1130 = vunpack.c.h.b16 %v671
    %v1131 = vunpack.c.l.b16 %v672
    %v1132 = vunpack.c.h.b16 %v672
    %v1133 = vunpack.c.l.b16 %v673
    %v1134 = vunpack.c.h.b16 %v673
    %v1135 = vunpack.c.l.b16 %v674
    %v1136 = vunpack.c.h.b16 %v674
    %v1137 = vunpack.c.l.b16 %v675
    %v1138 = vunpack.c.h.b16 %v675
    %v1139 = vunpack.c.l.b16 %v676
    %v1140 = vunpack.c.h.b16 %v676
    %v1141 = vunpack.c.l.b16 %v677
    %v1142 = vunpack.c.h.b16 %v677
    %v1143 = vunpack.c.l.b16 %v678
    %v1144 = vunpack.c.h.b16 %v678
    %v1145 = vunpack.c.l.b16 %v679
    %v1146 = vunpack.c.h.b16 %v679
    %v1147 = vunpack.c.l.b16 %v680
    %v1148 = vunpack.c.h.b16 %v680
    %v1149 = vunpack.c.l.b16 %v681
    %v1150 = vunpack.c.h.b16 %v681
    %v1151 = vunpack.c.l.b16 %v682
    %v1152 = vunpack.c.h.b16 %v682
    %v1153 = vunpack.c.l.b16 %v683
    %v1154 = vunpack.c.h.b16 %v683
    %v1155 = vunpack.c.l.b16 %v684
    %v1156 = vunpack.c.h.b16 %v684
    %v1157 = vunpack.c.l.b16 %v685
    %v1158 = vunpack.c.h.b16 %v685
    %v1159 = vunpack.c.l.b16 %v686
    %v1160 = vunpack.c.h.b16 %v686
    %v1161 = vunpack.c.l.b16 %v687
    %v1162 = vunpack.c.h.b16 %v687
    %v1163 = vunpack.c.l.b16 %v688
    %v1164 = vunpack.c.h.b16 %v688
    %v1165 = vunpack.c.l.b16 %v689
    %v1166 = vunpack.c.h.b16 %v689
    %v1167 = vunpack.c.l.b16 %v690
    %v1168 = vunpack.c.h.b16 %v690
    %v1169 = vunpack.c.l.b16 %v691
    %v1170 = vunpack.c.h.b16 %v691
    %v1171 = vunpack.c.l.b16 %v692
    %v1172 = vunpack.c.h.b16 %v692
    %v1173 = vunpack.c.l.b16 %v693
    %v1174 = vunpack.c.h.b16 %v693
    %v1175 = vunpack.c.l.b16 %v694
    %v1176 = vunpack.c.h.b16 %v694
    %v1177 = vunpack.c.l.b16 %v695
    %v1178 = vunpack.c.h.b16 %v695
    %v1179 = vunpack.c.l.b16 %v696
    %v1180 = vunpack.c.h.b16 %v696
    %v1181 = vunpack.c.l.b16 %v697
    %v1182 = vunpack.c.h.b16 %v697
    %v1183 = vunpack.c.l.b16 %v698
    %v1184 = vunpack.c.h.b16 %v698
    %v1185 = vunpack.c.l.b16 %v699
    %v1186 = vunpack.c.h.b16 %v699
    %v1187 = vunpack.c.l.b16 %v700
    %v1188 = vunpack.c.h.b16 %v700
    %v1189 = vunpack.c.l.b16 %v701
    %v1190 = vunpack.c.h.b16 %v701
    %v1191 = vunpack.c.l.b16 %v702
    %v1192 = vunpack.c.h.b16 %v702
    %v1193 = vunpack.c.l.b16 %v703
    %v1194 = vunpack.c.h.b16 %v703
    %v1195 = vunpack.c.l.b16 %v704
    %v1196 = vunpack.c.h.b16 %v704
    %v1197 = vunpack.c.l.b16 %v705
    %v1198 = vunpack.c.h.b16 %v705
    %v1199 = vunpack.c.l.b16 %v706
    %v1200 = vunpack.c.h.b16 %v706
    %v1201 = vunpack.c.l.b16 %v707
    %v1202 = vunpack.c.h.b16 %v707
    %v1203 = vunpack.c.l.b16 %v708
    %v1204 = vunpack.c.h.b16 %v708
    %v1205 = vunpack.c.l.b16 %v709
    %v1206 = vunpack.c.h.b16 %v709
    %v1207 = vunpack.c.l.b16 %v710
    %v1208 = vunpack.c.h.b16 %v710
    %v1209 = vunpack.c.l.b16 %v711
    %v1210 = vunpack.c.h.b16 %v711
    %v1211 = vunpack.c.l.b16 %v712
    %v1212 = vunpack.c.h.b16 %v712
    %v1213 = vunpack.c.l.b16 %v713
    %v1214 = vunpack.c.h.b16 %v713
    %v1215 = vunpack.c.l.b16 %v714
    %v1216 = vunpack.c.h.b16 %v714
    %v1217 = vunpack.c.l.b16 %v715
    %v1218 = vunpack.c.h.b16 %v715
    %v1219 = vunpack.c.l.b16 %v716
    %v1220 = vunpack.c.h.b16 %v716
    %v1221 = vunpack.c.l.b16 %v717
    %v1222 = vunpack.c.h.b16 %v717
    %v1223 = vunpack.c.l.b16 %v718
    %v1224 = vunpack.c.h.b16 %v718
    %v1225 = vunpack.c.l.b16 %v719
    %v1226 = vunpack.c.h.b16 %v719
    %v1227 = vunpack.c.l.b16 %v720
    %v1228 = vunpack.c.h.b16 %v720
    %v1229 = vunpack.c.l.b16 %v721
    %v1230 = vunpack.c.h.b16 %v721
    %v1231 = vunpack.c.l.b16 %v722
    %v1232 = vunpack.c.h.b16 %v722
    %v1233 = vunpack.c.l.b16 %v723
    %v1234 = vunpack.c.h.b16 %v723
    %v1235 = vunpack.c.l.b16 %v724
    %v1236 = vunpack.c.h.b16 %v724
    %v1237 = vunpack.c.l.b16 %v725
    %v1238 = vunpack.c.h.b16 %v725
    %v1239 = vunpack.c.l.b16 %v726
    %v1240 = vunpack.c.h.b16 %v726
    %v1241 = vunpack.c.l.b16 %v727
    %v1242 = vunpack.c.h.b16 %v727
    %v1243 = vunpack.c.l.b16 %v728
    %v1244 = vunpack.c.h.b16 %v728
    %v1245 = vunpack.c.l.b16 %v729
    %v1246 = vunpack.c.h.b16 %v729
    %v1247 = vunpack.c.l.b16 %v730
    %v1248 = vunpack.c.h.b16 %v730
    %v1249 = vunpack.c.l.b16 %v731
    %v1250 = vunpack.c.h.b16 %v731
    %v1251 = vunpack.c.l.b16 %v732
    %v1252 = vunpack.c.h.b16 %v732
    %v1253 = vunpack.c.l.b16 %v733
    %v1254 = vunpack.c.h.b16 %v733
    %v1255 = vunpack.c.l.b16 %v734
    %v1256 = vunpack.c.h.b16 %v734
    %v1257 = vunpack.c.l.b16 %v735
    %v1258 = vunpack.c.h.b16 %v735
    %v1259 = vunpack.c.l.b16 %v736
    %v1260 = vunpack.c.h.b16 %v736
    %v1261 = vunpack.c.l.b16 %v737
    %v1262 = vunpack.c.h.b16 %v737
    %v1263 = vunpack.c.l.b16 %v738
    %v1264 = vunpack.c.h.b16 %v738
    %v1265 = vunpack.c.l.b16 %v739
    %v1266 = vunpack.c.h.b16 %v739
    %v1267 = vunpack.c.l.b16 %v740
    %v1268 = vunpack.c.h.b16 %v740
    %v1269 = vunpack.c.l.b16 %v741
    %v1270 = vunpack.c.h.b16 %v741
    %v1271 = vunpack.c.l.b16 %v742
    %v1272 = vunpack.c.h.b16 %v742
    %v1273 = vunpack.c.l.b16 %v743
    %v1274 = vunpack.c.h.b16 %v743
    %v1275 = vunpack.c.l.b16 %v744
    %v1276 = vunpack.c.h.b16 %v744
    %v1277 = vunpack.c.l.b16 %v745
    %v1278 = vunpack.c.h.b16 %v745
    %v1279 = vunpack.c.l.b16 %v746
    %v1280 = vunpack.c.h.b16 %v746
    %v1281 = vunpack.c.l.b16 %v747
    %v1282 = vunpack.c.h.b16 %v747
    %v1283 = vunpack.c.l.b16 %v748
    %v1284 = vunpack.c.h.b16 %v748
    %v1285 = vunpack.c.l.b16 %v749
    %v1286 = vunpack.c.h.b16 %v749
    %v1287 = vunpack.c.l.b16 %v750
    %v1288 = vunpack.c.h.b16 %v750
    %v1289 = vunpack.c.l.b16 %v751
    %v1290 = vunpack.c.h.b16 %v751
    %v1291 = vunpack.c.l.b16 %v752
    %v1292 = vunpack.c.h.b16 %v752
    %v1293 = vunpack.c.l.b16 %v753
    %v1294 = vunpack.c.h.b16 %v753
    %v1295 = vunpack.c.l.b16 %v754
    %v1296 = vunpack.c.h.b16 %v754
    %v1297 = vunpack.c.l.b16 %v755
    %v1298 = vunpack.c.h.b16 %v755
    %v1299 = vunpack.c.l.b16 %v756
    %v1300 = vunpack.c.h.b16 %v756
    %v1301 = vunpack.c.l.b16 %v757
    %v1302 = vunpack.c.h.b16 %v757
    %v1303 = vunpack.c.l.b16 %v758
    %v1304 = vunpack.c.h.b16 %v758
    %v1305 = vunpack.c.l.b16 %v759
    %v1306 = vunpack.c.h.b16 %v759
    %v1307 = vunpack.c.l.b16 %v760
    %v1308 = vunpack.c.h.b16 %v760
    %v1309 = vunpack.c.l.b16 %v761
    %v1310 = vunpack.c.h.b16 %v761
    %v1311 = vunpack.c.l.b16 %v762
    %v1312 = vunpack.c.h.b16 %v762
    %v1313 = vunpack.c.l.b16 %v763
    %v1314 = vunpack.c.h.b16 %v763
    %v1315 = vunpack.c.l.b16 %v764
    %v1316 = vunpack.c.h.b16 %v764
    %v1317 = vunpack.c.l.b16 %v765
    %v1318 = vunpack.c.h.b16 %v765
    %v1319 = vunpack.c.l.b16 %v766
    %v1320 = vunpack.c.h.b16 %v766
    %v1321 = vunpack.c.l.b16 %v767
    %v1322 = vunpack.c.h.b16 %v767
    %v1323 = vunpack.c.l.b16 %v768
    %v1324 = vunpack.c.h.b16 %v768
    %v1325 = vunpack.c.l.b16 %v769
    %v1326 = vunpack.c.h.b16 %v769
    %v1327 = vunpack.c.l.b16 %v770
    %v1328 = vunpack.c.h.b16 %v770
    %v1329 = vunpack.c.l.b16 %v771
    %v1330 = vunpack.c.h.b16 %v771
    %v1331 = vunpack.c.l.b16 %v772
    %v1332 = vunpack.c.h.b16 %v772
    %v1333 = vunpack.c.l.b16 %v773
    %v1334 = vunpack.c.h.b16 %v773
    %v1335 = vunpack.c.l.b16 %v774
    %v1336 = vunpack.c.h.b16 %v774
    %v1337 = vunpack.c.l.b16 %v775
    %v1338 = vunpack.c.h.b16 %v775
    %v1339 = vunpack.c.l.b16 %v776
    %v1340 = vunpack.c.h.b16 %v776
    %v1341 = vunpack.c.l.b16 %v777
    %v1342 = vunpack.c.h.b16 %v777
    %v1343 = vunpack.c.l.b16 %v778
    %v1344 = vunpack.c.h.b16 %v778
    %v1345 = vunpack.c.l.b16 %v779
    %v1346 = vunpack.c.h.b16 %v779
    %v1347 = vunpack.c.l.b16 %v780
    %v1348 = vunpack.c.h.b16 %v780
    %v1349 = vunpack.c.l.b16 %v781
    %v1350 = vunpack.c.h.b16 %v781
    %v1351 = vunpack.c.l.b16 %v782
    %v1352 = vunpack.c.h.b16 %v782
    %v1353 = vunpack.c.l.b16 %v783
    %v1354 = vunpack.c.h.b16 %v783
    %v1355 = vunpack.c.l.b16 %v784
    %v1356 = vunpack.c.h.b16 %v784
    %v1357 = vunpack.c.l.b16 %v785
    %v1358 = vunpack.c.h.b16 %v785
    %v1359 = vunpack.c.l.b16 %v786
    %v1360 = vunpack.c.h.b16 %v786
    %v1361 = vunpack.c.l.b16 %v787
    %v1362 = vunpack.c.h.b16 %v787
    %v1363 = vunpack.c.l.b16 %v788
    %v1364 = vunpack.c.h.b16 %v788
    %v1365 = vunpack.c.l.b16 %v789
    %v1366 = vunpack.c.h.b16 %v789
    %v1367 = vunpack.c.l.b16 %v790
    %v1368 = vunpack.c.h.b16 %v790
    %v1369 = vunpack.c.l.b16 %v791
    %v1370 = vunpack.c.h.b16 %v791
    %v1371 = vunpack.c.l.b16 %v792
    %v1372 = vunpack.c.h.b16 %v792
    %v1373 = vunpack.c.l.b16 %v793
    %v1374 = vunpack.c.h.b16 %v793
    %v1375 = vunpack.c.l.b16 %v794
    %v1376 = vunpack.c.h.b16 %v794
    %v1377 = vunpack.c.l.b16 %v795
    %v1378 = vunpack.c.h.b16 %v795
    %v1379 = vunpack.c.l.b16 %v796
    %v1380 = vunpack.c.h.b16 %v796
    %v1381 = vunpack.c.l.b16 %v797
    %v1382 = vunpack.c.h.b16 %v797
    %v1383 = vunpack.c.l.b16 %v798
    %v1384 = vunpack.c.h.b16 %v798
    %v1385 = vunpack.c.l.b16 %v799
    %v1386 = vunpack.c.h.b16 %v799
    %v1387 = vunpack.c.l.b16 %v800
    %v1388 = vunpack.c.h.b16 %v800
    %v1389 = vunpack.c.l.b16 %v801
    %v1390 = vunpack.c.h.b16 %v801
    %v1391 = vpack.c.b16 %v1013, %v1007
    %v1392 = vpack.c.b16 %v1014, %v1008
    %v1393 = vpack.c.b16 %v1015, %v1009
    %v1394 = vpack.c.b16 %v1016, %v1010
    %v1395 = vpack.c.b16 %v1017, %v1011
    %v1396 = vpack.c.b16 %v1018, %v1012
    %v1397 = vpack.c.b16 %v1025, %v1019
    %v1398 = vpack.c.b16 %v1026, %v1020
    %v1399 = vpack.c.b16 %v1027, %v1021
    %v1400 = vpack.c.b16 %v1028, %v1022
    %v1401 = vpack.c.b16 %v1029, %v1023
    %v1402 = vpack.c.b16 %v1030, %v1024
    %v1403 = vpack.c.b16 %v1037, %v1031
    %v1404 = vpack.c.b16 %v1038, %v1032
    %v1405 = vpack.c.b16 %v1039, %v1033
    %v1406 = vpack.c.b16 %v1040, %v1034
    %v1407 = vpack.c.b16 %v1041, %v1035
    %v1408 = vpack.c.b16 %v1042, %v1036
    %v1409 = vpack.c.b16 %v1049, %v1043
    %v1410 = vpack.c.b16 %v1050, %v1044
    %v1411 = vpack.c.b16 %v1051, %v1045
    %v1412 = vpack.c.b16 %v1052, %v1046
    %v1413 = vpack.c.b16 %v1053, %v1047
    %v1414 = vpack.c.b16 %v1054, %v1048
    %v1415 = vpack.c.b16 %v1061, %v1055
    %v1416 = vpack.c.b16 %v1062, %v1056
    %v1417 = vpack.c.b16 %v1063, %v1057
    %v1418 = vpack.c.b16 %v1064, %v1058
    %v1419 = vpack.c.b16 %v1065, %v1059
    %v1420 = vpack.c.b16 %v1066, %v1060
    %v1421 = vpack.c.b16 %v1073, %v1067
    %v1422 = vpack.c.b16 %v1074, %v1068
    %v1423 = vpack.c.b16 %v1075, %v1069
    %v1424 = vpack.c.b16 %v1076, %v1070
    %v1425 = vpack.c.b16 %v1077, %v1071
    %v1426 = vpack.c.b16 %v1078, %v1072
    %v1427 = vpack.c.b16 %v1085, %v1079
    %v1428 = vpack.c.b16 %v1086, %v1080
    %v1429 = vpack.c.b16 %v1087, %v1081
    %v1430 = vpack.c.b16 %v1088, %v1082
    %v1431 = vpack.c.b16 %v1089, %v1083
    %v1432 = vpack.c.b16 %v1090, %v1084
    %v1433 = vpack.c.b16 %v1097, %v1091
    %v1434 = vpack.c.b16 %v1098, %v1092
    %v1435 = vpack.c.b16 %v1099, %v1093
    %v1436 = vpack.c.b16 %v1100, %v1094
    %v1437 = vpack.c.b16 %v1101, %v1095
    %v1438 = vpack.c.b16 %v1102, %v1096
    %v1439 = vpack.c.b16 %v1109, %v1103
    %v1440 = vpack.c.b16 %v1110, %v1104
    %v1441 = vpack.c.b16 %v1111, %v1105
    %v1442 = vpack.c.b16 %v1112, %v1106
    %v1443 = vpack.c.b16 %v1113, %v1107
    %v1444 = vpack.c.b16 %v1114, %v1108
    %v1445 = vpack.c.b16 %v1121, %v1115
    %v1446 = vpack.c.b16 %v1122, %v1116
    %v1447 = vpack.c.b16 %v1123, %v1117
    %v1448 = vpack.c.b16 %v1124, %v1118
    %v1449 = vpack.c.b16 %v1125, %v1119
    %v1450 = vpack.c.b16 %v1126, %v1120
    %v1451 = vpack.c.b16 %v1133, %v1127
    %v1452 = vpack.c.b16 %v1134, %v1128
    %v1453 = vpack.c.b16 %v1135, %v1129
    %v1454 = vpack.c.b16 %v1136, %v1130
    %v1455 = vpack.c.b16 %v1137, %v1131
    %v1456 = vpack.c.b16 %v1138, %v1132
    %v1457 = vpack.c.b16 %v1145, %v1139
    %v1458 = vpack.c.b16 %v1146, %v1140
    %v1459 = vpack.c.b16 %v1147, %v1141
    %v1460 = vpack.c.b16 %v1148, %v1142
    %v1461 = vpack.c.b16 %v1149, %v1143
    %v1462 = vpack.c.b16 %v1150, %v1144
    %v1463 = vpack.c.b16 %v1157, %v1151
    %v1464 = vpack.c.b16 %v1158, %v1152
    %v1465 = vpack.c.b16 %v1159, %v1153
    %v1466 = vpack.c.b16 %v1160, %v1154
    %v1467 = vpack.c.b16 %v1161, %v1155
    %v1468 = vpack.c.b16 %v1162, %v1156
    %v1469 = vpack.c.b16 %v1169, %v1163
    %v1470 = vpack.c.b16 %v1170, %v1164
    %v1471 = vpack.c.b16 %v1171, %v1165
    %v1472 = vpack.c.b16 %v1172, %v1166
    %v1473 = vpack.c.b16 %v1173, %v1167
    %v1474 = vpack.c.b16 %v1174, %v1168
    %v1475 = vpack.c.b16 %v1181, %v1175
    %v1476 = vpack.c.b16 %v1182, %v1176
    %v1477 = vpack.c.b16 %v1183, %v1177
    %v1478 = vpack.c.b16 %v1184, %v1178
    %v1479 = vpack.c.b16 %v1185, %v1179
    %v1480 = vpack.c.b16 %v1186, %v1180
    %v1481 = vpack.c.b16 %v1193, %v1187
    %v1482 = vpack.c.b16 %v1194, %v1188
    %v1483 = vpack.c.b16 %v1195, %v1189
    %v1484 = vpack.c.b16 %v1196, %v1190
    %v1485 = vpack.c.b16 %v1197, %v1191
    %v1486 = vpack.c.b16 %v1198, %v1192
    %v1487 = vpack.c.b16 %v1205, %v1199
    %v1488 = vpack.c.b16 %v1206, %v1200
    %v1489 = vpack.c.b16 %v1207, %v1201
    %v1490 = vpack.c.b16 %v1208, %v1202
    %v1491 = vpack.c.b16 %v1209, %v1203
    %v1492 = vpack.c.b16 %v1210, %v1204
    %v1493 = vpack.c.b16 %v1217, %v1211
    %v1494 = vpack.c.b16 %v1218, %v1212
    %v1495 = vpack.c.b16 %v1219, %v1213
    %v1496 = vpack.c.b16 %v1220, %v1214
    %v1497 = vpack.c.b16 %v1221, %v1215
    %v1498 = vpack.c.b16 %v1222, %v1216
    %v1499 = vpack.c.b16 %v1229, %v1223
    %v1500 = vpack.c.b16 %v1230, %v1224
    %v1501 = vpack.c.b16 %v1231, %v1225
    %v1502 = vpack.c.b16 %v1232, %v1226
    %v1503 = vpack.c.b16 %v1233, %v1227
    %v1504 = vpack.c.b16 %v1234, %v1228
    %v1505 = vpack.c.b16 %v1241, %v1235
    %v1506 = vpack.c.b16 %v1242, %v1236
    %v1507 = vpack.c.b16 %v1243, %v1237
    %v1508 = vpack.c.b16 %v1244, %v1238
    %v1509 = vpack.c.b16 %v1245, %v1239
    %v1510 = vpack.c.b16 %v1246, %v1240
    %v1511 = vpack.c.b16 %v1253, %v1247
    %v1512 = vpack.c.b16 %v1254, %v1248
    %v1513 = vpack.c.b16 %v1255, %v1249
    %v1514 = vpack.c.b16 %v1256, %v1250
    %v1515 = vpack.c.b16 %v1257, %v1251
    %v1516 = vpack.c.b16 %v1258, %v1252
    %v1517 = vpack.c.b16 %v1265, %v1259
    %v1518 = vpack.c.b16 %v1266, %v1260
    %v1519 = vpack.c.b16 %v1267, %v1261
    %v1520 = vpack.c.b16 %v1268, %v1262
    %v1521 = vpack.c.b16 %v1269, %v1263
    %v1522 = vpack.c.b16 %v1270, %v1264
    %v1523 = vpack.c.b16 %v1277, %v1271
    %v1524 = vpack.c.b16 %v1278, %v1272
    %v1525 = vpack.c.b16 %v1279, %v1273
    %v1526 = vpack.c.b16 %v1280, %v1274
    %v1527 = vpack.c.b16 %v1281, %v1275
    %v1528 = vpack.c.b16 %v1282, %v1276
    %v1529 = vpack.c.b16 %v1289, %v1283
    %v1530 = vpack.c.b16 %v1290, %v1284
    %v1531 = vpack.c.b16 %v1291, %v1285
    %v1532 = vpack.c.b16 %v1292, %v1286
    %v1533 = vpack.c.b16 %v1293, %v1287
    %v1534 = vpack.c.b16 %v1294, %v1288
    %v1535 = vpack.c.b16 %v1301, %v1295
    %v1536 = vpack.c.b16 %v1302, %v1296
    %v1537 = vpack.c.b16 %v1303, %v1297
    %v1538 = vpack.c.b16 %v1304, %v1298
    %v1539 = vpack.c.b16 %v1305, %v1299
    %v1540 = vpack.c.b16 %v1306, %v1300
    %v1541 = vpack.c.b16 %v1313, %v1307
    %v1542 = vpack.c.b16 %v1314, %v1308
    %v1543 = vpack.c.b16 %v1315, %v1309
    %v1544 = vpack.c.b16 %v1316, %v1310
    %v1545 = vpack.c.b16 %v1317, %v1311
    %v1546 = vpack.c.b16 %v1318, %v1312
    %v1547 = vpack.c.b16 %v1325, %v1319
    %v1548 = vpack.c.b16 %v1326, %v1320
    %v1549 = vpack.c.b16 %v1327, %v1321
    %v1550 = vpack.c.b16 %v1328, %v1322
    %v1551 = vpack.c.b16 %v1329, %v1323
    %v1552 = vpack.c.b16 %v1330, %v1324
    %v1553 = vpack.c.b16 %v1337, %v1331
    %v1554 = vpack.c.b16 %v1338, %v1332
    %v1555 = vpack.c.b16 %v1339, %v1333
    %v1556 = vpack.c.b16 %v1340, %v1334
    %v1557 = vpack.c.b16 %v1341, %v1335
    %v1558 = vpack.c.b16 %v1342, %v1336
    %v1559 = vpack.c.b16 %v1349, %v1343
    %v1560 = vpack.c.b16 %v1350, %v1344
    %v1561 = vpack.c.b16 %v1351, %v1345
    %v1562 = vpack.c.b16 %v1352, %v1346
    %v1563 = vpack.c.b16 %v1353, %v1347
    %v1564 = vpack.c.b16 %v1354, %v1348
    %v1565 = vpack.c.b16 %v1361, %v1355
    %v1566 = vpack.c.b16 %v1362, %v1356
    %v1567 = vpack.c.b16 %v1363, %v1357
    %v1568 = vpack.c.b16 %v1364, %v1358
    %v1569 = vpack.c.b16 %v1365, %v1359
    %v1570 = vpack.c.b16 %v1366, %v1360
    %v1571 = vpack.c.b16 %v1373, %v1367
    %v1572 = vpack.c.b16 %v1374, %v1368
    %v1573 = vpack.c.b16 %v1375, %v1369
    %v1574 = vpack.c.b16 %v1376, %v1370
    %v1575 = vpack.c.b16 %v1377, %v1371
    %v1576 = vpack.c.b16 %v1378, %v1372
    %v1577 = vpack.c.b16 %v1385, %v1379
    %v1578 = vpack.c.b16 %v1386, %v1380
    %v1579 = vpack.c.b16 %v1387, %v1381
    %v1580 = vpack.c.b16 %v1388, %v1382
    %v1581 = vpack.c.b16 %v1389, %v1383
    %v1582 = vpack.c.b16 %v1390, %v1384
    %1775 = vmatpush.bf16.msra.mxu0 %v1433
    %1776 = vmatpush.bf16.msra.mxu0 %v1427
    %1777 = vmatpush.bf16.msra.mxu0 %v1421
    %1778 = vmatpush.bf16.msra.mxu0 %v1415
    %1779 = vmatpush.bf16.msra.mxu0 %v1409
    %1780 = vmatpush.bf16.msra.mxu0 %v1403
    %1781 = vmatpush.bf16.msra.mxu0 %v1397
    %1782 = vmatpush.bf16.msra.mxu0 %v1391
    %1783 = vmatmul.bf16.gmra.mxu0 %v606
    %v1784 = vpop.f32.mrf.mxu0
    %v1785 = vadd.f32 %v803, %v1784
    %v1786 = vpop.f32.mrf.mxu0
    %1787 = vdwg.mxu0
    %1788 = vmatpush.bf16.msra.mxu0 %v1481
    %1789 = vmatpush.bf16.msra.mxu0 %v1475
    %1790 = vmatpush.bf16.msra.mxu0 %v1469
    %1791 = vmatpush.bf16.msra.mxu0 %v1463
    %1792 = vmatpush.bf16.msra.mxu0 %v1457
    %1793 = vmatpush.bf16.msra.mxu0 %v1451
    %1794 = vmatpush.bf16.msra.mxu0 %v1445
    %1795 = vmatpush.bf16.msra.mxu0 %v1439
    %1796 = vmatmul.bf16.gmra.mxu0 %v607
    %v1797 = vpop.f32.mrf.mxu0
    %v1798 = vadd.f32 %v1785, %v1797
    %v1799 = vpop.f32.mrf.mxu0
    %1800 = vdwg.mxu0
    %1801 = vmatpush.bf16.msra.mxu0 %v1529
    %1802 = vmatpush.bf16.msra.mxu0 %v1523
    %1803 = vmatpush.bf16.msra.mxu0 %v1517
    %1804 = vmatpush.bf16.msra.mxu0 %v1511
    %1805 = vmatpush.bf16.msra.mxu0 %v1505
    %1806 = vmatpush.bf16.msra.mxu0 %v1499
    %1807 = vmatpush.bf16.msra.mxu0 %v1493
    %1808 = vmatpush.bf16.msra.mxu0 %v1487
    %1809 = vmatmul.bf16.gmra.mxu0 %v608
    %v1810 = vpop.f32.mrf.mxu0
    %v1811 = vadd.f32 %v1798, %v1810
    %v1812 = vpop.f32.mrf.mxu0
    %1813 = vdwg.mxu0
    %1814 = vmatpush.bf16.msra.mxu0 %v1577
    %1815 = vmatpush.bf16.msra.mxu0 %v1571
    %1816 = vmatpush.bf16.msra.mxu0 %v1565
    %1817 = vmatpush.bf16.msra.mxu0 %v1559
    %1818 = vmatpush.bf16.msra.mxu0 %v1553
    %1819 = vmatpush.bf16.msra.mxu0 %v1547
    %1820 = vmatpush.bf16.msra.mxu0 %v1541
    %1821 = vmatpush.bf16.msra.mxu0 %v1535
    %1822 = vmatmul.bf16.gmra.mxu0 %v609
    %v1823 = vpop.f32.mrf.mxu0
    %v1824 = vadd.f32 %v1811, %v1823
    %v1825 = vpop.f32.mrf.mxu0
    %1826 = vdwg.mxu0
    %1827 = vmatpush.bf16.msra.mxu0 %v1434
    %1828 = vmatpush.bf16.msra.mxu0 %v1428
    %1829 = vmatpush.bf16.msra.mxu0 %v1422
    %1830 = vmatpush.bf16.msra.mxu0 %v1416
    %1831 = vmatpush.bf16.msra.mxu0 %v1410
    %1832 = vmatpush.bf16.msra.mxu0 %v1404
    %1833 = vmatpush.bf16.msra.mxu0 %v1398
    %1834 = vmatpush.bf16.msra.mxu0 %v1392
    %1835 = vmatmul.bf16.gmra.mxu0 %v606
    %v1836 = vpop.f32.mrf.mxu0
    %v1837 = vadd.f32 %v804, %v1836
    %v1838 = vpop.f32.mrf.mxu0
    %1839 = vdwg.mxu0
    %1840 = vmatpush.bf16.msra.mxu0 %v1482
    %1841 = vmatpush.bf16.msra.mxu0 %v1476
    %1842 = vmatpush.bf16.msra.mxu0 %v1470
    %1843 = vmatpush.bf16.msra.mxu0 %v1464
    %1844 = vmatpush.bf16.msra.mxu0 %v1458
    %1845 = vmatpush.bf16.msra.mxu0 %v1452
    %1846 = vmatpush.bf16.msra.mxu0 %v1446
    %1847 = vmatpush.bf16.msra.mxu0 %v1440
    %1848 = vmatmul.bf16.gmra.mxu0 %v607
    %v1849 = vpop.f32.mrf.mxu0
    %v1850 = vadd.f32 %v1837, %v1849
    %v1851 = vpop.f32.mrf.mxu0
    %1852 = vdwg.mxu0
    %1853 = vmatpush.bf16.msra.mxu0 %v1530
    %1854 = vmatpush.bf16.msra.mxu0 %v1524
    %1855 = vmatpush.bf16.msra.mxu0 %v1518
    %1856 = vmatpush.bf16.msra.mxu0 %v1512
    %1857 = vmatpush.bf16.msra.mxu0 %v1506
    %1858 = vmatpush.bf16.msra.mxu0 %v1500
    %1859 = vmatpush.bf16.msra.mxu0 %v1494
    %1860 = vmatpush.bf16.msra.mxu0 %v1488
    %1861 = vmatmul.bf16.gmra.mxu0 %v608
    %v1862 = vpop.f32.mrf.mxu0
    %v1863 = vadd.f32 %v1850, %v1862
    %v1864 = vpop.f32.mrf.mxu0
    %1865 = vdwg.mxu0
    %1866 = vmatpush.bf16.msra.mxu0 %v1578
    %1867 = vmatpush.bf16.msra.mxu0 %v1572
    %1868 = vmatpush.bf16.msra.mxu0 %v1566
    %1869 = vmatpush.bf16.msra.mxu0 %v1560
    %1870 = vmatpush.bf16.msra.mxu0 %v1554
    %1871 = vmatpush.bf16.msra.mxu0 %v1548
    %1872 = vmatpush.bf16.msra.mxu0 %v1542
    %1873 = vmatpush.bf16.msra.mxu0 %v1536
    %1874 = vmatmul.bf16.gmra.mxu0 %v609
    %v1875 = vpop.f32.mrf.mxu0
    %v1876 = vadd.f32 %v1863, %v1875
    %v1877 = vpop.f32.mrf.mxu0
    %1878 = vdwg.mxu0
    %1879 = vmatpush.bf16.msra.mxu0 %v1435
    %1880 = vmatpush.bf16.msra.mxu0 %v1429
    %1881 = vmatpush.bf16.msra.mxu0 %v1423
    %1882 = vmatpush.bf16.msra.mxu0 %v1417
    %1883 = vmatpush.bf16.msra.mxu0 %v1411
    %1884 = vmatpush.bf16.msra.mxu0 %v1405
    %1885 = vmatpush.bf16.msra.mxu0 %v1399
    %1886 = vmatpush.bf16.msra.mxu0 %v1393
    %1887 = vmatmul.bf16.gmra.mxu0 %v606
    %v1888 = vpop.f32.mrf.mxu0
    %v1889 = vadd.f32 %v805, %v1888
    %v1890 = vpop.f32.mrf.mxu0
    %1891 = vdwg.mxu0
    %1892 = vmatpush.bf16.msra.mxu0 %v1483
    %1893 = vmatpush.bf16.msra.mxu0 %v1477
    %1894 = vmatpush.bf16.msra.mxu0 %v1471
    %1895 = vmatpush.bf16.msra.mxu0 %v1465
    %1896 = vmatpush.bf16.msra.mxu0 %v1459
    %1897 = vmatpush.bf16.msra.mxu0 %v1453
    %1898 = vmatpush.bf16.msra.mxu0 %v1447
    %1899 = vmatpush.bf16.msra.mxu0 %v1441
    %1900 = vmatmul.bf16.gmra.mxu0 %v607
    %v1901 = vpop.f32.mrf.mxu0
    %v1902 = vadd.f32 %v1889, %v1901
    %v1903 = vpop.f32.mrf.mxu0
    %1904 = vdwg.mxu0
    %1905 = vmatpush.bf16.msra.mxu0 %v1531
    %1906 = vmatpush.bf16.msra.mxu0 %v1525
    %1907 = vmatpush.bf16.msra.mxu0 %v1519
    %1908 = vmatpush.bf16.msra.mxu0 %v1513
    %1909 = vmatpush.bf16.msra.mxu0 %v1507
    %1910 = vmatpush.bf16.msra.mxu0 %v1501
    %1911 = vmatpush.bf16.msra.mxu0 %v1495
    %1912 = vmatpush.bf16.msra.mxu0 %v1489
    %1913 = vmatmul.bf16.gmra.mxu0 %v608
    %v1914 = vpop.f32.mrf.mxu0
    %v1915 = vadd.f32 %v1902, %v1914
    %v1916 = vpop.f32.mrf.mxu0
    %1917 = vdwg.mxu0
    %1918 = vmatpush.bf16.msra.mxu0 %v1579
    %1919 = vmatpush.bf16.msra.mxu0 %v1573
    %1920 = vmatpush.bf16.msra.mxu0 %v1567
    %1921 = vmatpush.bf16.msra.mxu0 %v1561
    %1922 = vmatpush.bf16.msra.mxu0 %v1555
    %1923 = vmatpush.bf16.msra.mxu0 %v1549
    %1924 = vmatpush.bf16.msra.mxu0 %v1543
    %1925 = vmatpush.bf16.msra.mxu0 %v1537
    %1926 = vmatmul.bf16.gmra.mxu0 %v609
    %v1927 = vpop.f32.mrf.mxu0
    %v1928 = vadd.f32 %v1915, %v1927
    %v1929 = vpop.f32.mrf.mxu0
    %1930 = vdwg.mxu0
    %1931 = vmatpush.bf16.msra.mxu0 %v1436
    %1932 = vmatpush.bf16.msra.mxu0 %v1430
    %1933 = vmatpush.bf16.msra.mxu0 %v1424
    %1934 = vmatpush.bf16.msra.mxu0 %v1418
    %1935 = vmatpush.bf16.msra.mxu0 %v1412
    %1936 = vmatpush.bf16.msra.mxu0 %v1406
    %1937 = vmatpush.bf16.msra.mxu0 %v1400
    %1938 = vmatpush.bf16.msra.mxu0 %v1394
    %1939 = vmatmul.bf16.gmra.mxu0 %v606
    %v1940 = vpop.f32.mrf.mxu0
    %v1941 = vadd.f32 %v806, %v1940
    %v1942 = vpop.f32.mrf.mxu0
    %1943 = vdwg.mxu0
    %1944 = vmatpush.bf16.msra.mxu0 %v1484
    %1945 = vmatpush.bf16.msra.mxu0 %v1478
    %1946 = vmatpush.bf16.msra.mxu0 %v1472
    %1947 = vmatpush.bf16.msra.mxu0 %v1466
    %1948 = vmatpush.bf16.msra.mxu0 %v1460
    %1949 = vmatpush.bf16.msra.mxu0 %v1454
    %1950 = vmatpush.bf16.msra.mxu0 %v1448
    %1951 = vmatpush.bf16.msra.mxu0 %v1442
    %1952 = vmatmul.bf16.gmra.mxu0 %v607
    %v1953 = vpop.f32.mrf.mxu0
    %v1954 = vadd.f32 %v1941, %v1953
    %v1955 = vpop.f32.mrf.mxu0
    %1956 = vdwg.mxu0
    %1957 = vmatpush.bf16.msra.mxu0 %v1532
    %1958 = vmatpush.bf16.msra.mxu0 %v1526
    %1959 = vmatpush.bf16.msra.mxu0 %v1520
    %1960 = vmatpush.bf16.msra.mxu0 %v1514
    %1961 = vmatpush.bf16.msra.mxu0 %v1508
    %1962 = vmatpush.bf16.msra.mxu0 %v1502
    %1963 = vmatpush.bf16.msra.mxu0 %v1496
    %1964 = vmatpush.bf16.msra.mxu0 %v1490
    %1965 = vmatmul.bf16.gmra.mxu0 %v608
    %v1966 = vpop.f32.mrf.mxu0
    %v1967 = vadd.f32 %v1954, %v1966
    %v1968 = vpop.f32.mrf.mxu0
    %1969 = vdwg.mxu0
    %1970 = vmatpush.bf16.msra.mxu0 %v1580
    %1971 = vmatpush.bf16.msra.mxu0 %v1574
    %1972 = vmatpush.bf16.msra.mxu0 %v1568
    %1973 = vmatpush.bf16.msra.mxu0 %v1562
    %1974 = vmatpush.bf16.msra.mxu0 %v1556
    %1975 = vmatpush.bf16.msra.mxu0 %v1550
    %1976 = vmatpush.bf16.msra.mxu0 %v1544
    %1977 = vmatpush.bf16.msra.mxu0 %v1538
    %1978 = vmatmul.bf16.gmra.mxu0 %v609
    %v1979 = vpop.f32.mrf.mxu0
    %v1980 = vadd.f32 %v1967, %v1979
    %v1981 = vpop.f32.mrf.mxu0
    %1982 = vdwg.mxu0
    %1983 = vmatpush.bf16.msra.mxu0 %v1437
    %1984 = vmatpush.bf16.msra.mxu0 %v1431
    %1985 = vmatpush.bf16.msra.mxu0 %v1425
    %1986 = vmatpush.bf16.msra.mxu0 %v1419
    %1987 = vmatpush.bf16.msra.mxu0 %v1413
    %1988 = vmatpush.bf16.msra.mxu0 %v1407
    %1989 = vmatpush.bf16.msra.mxu0 %v1401
    %1990 = vmatpush.bf16.msra.mxu0 %v1395
    %1991 = vmatmul.bf16.gmra.mxu0 %v606
    %v1992 = vpop.f32.mrf.mxu0
    %v1993 = vadd.f32 %v807, %v1992
    %v1994 = vpop.f32.mrf.mxu0
    %1995 = vdwg.mxu0
    %1996 = vmatpush.bf16.msra.mxu0 %v1485
    %1997 = vmatpush.bf16.msra.mxu0 %v1479
    %1998 = vmatpush.bf16.msra.mxu0 %v1473
    %1999 = vmatpush.bf16.msra.mxu0 %v1467
    %2000 = vmatpush.bf16.msra.mxu0 %v1461
    %2001 = vmatpush.bf16.msra.mxu0 %v1455
    %2002 = vmatpush.bf16.msra.mxu0 %v1449
    %2003 = vmatpush.bf16.msra.mxu0 %v1443
    %2004 = vmatmul.bf16.gmra.mxu0 %v607
    %v2005 = vpop.f32.mrf.mxu0
    %v2006 = vadd.f32 %v1993, %v2005
    %v2007 = vpop.f32.mrf.mxu0
    %2008 = vdwg.mxu0
    %2009 = vmatpush.bf16.msra.mxu0 %v1533
    %2010 = vmatpush.bf16.msra.mxu0 %v1527
    %2011 = vmatpush.bf16.msra.mxu0 %v1521
    %2012 = vmatpush.bf16.msra.mxu0 %v1515
    %2013 = vmatpush.bf16.msra.mxu0 %v1509
    %2014 = vmatpush.bf16.msra.mxu0 %v1503
    %2015 = vmatpush.bf16.msra.mxu0 %v1497
    %2016 = vmatpush.bf16.msra.mxu0 %v1491
    %2017 = vmatmul.bf16.gmra.mxu0 %v608
    %v2018 = vpop.f32.mrf.mxu0
    %v2019 = vadd.f32 %v2006, %v2018
    %v2020 = vpop.f32.mrf.mxu0
    %2021 = vdwg.mxu0
    %2022 = vmatpush.bf16.msra.mxu0 %v1581
    %2023 = vmatpush.bf16.msra.mxu0 %v1575
    %2024 = vmatpush.bf16.msra.mxu0 %v1569
    %2025 = vmatpush.bf16.msra.mxu0 %v1563
    %2026 = vmatpush.bf16.msra.mxu0 %v1557
    %2027 = vmatpush.bf16.msra.mxu0 %v1551
    %2028 = vmatpush.bf16.msra.mxu0 %v1545
    %2029 = vmatpush.bf16.msra.mxu0 %v1539
    %2030 = vmatmul.bf16.gmra.mxu0 %v609
    %v2031 = vpop.f32.mrf.mxu0
    %v2032 = vadd.f32 %v2019, %v2031
    %v2033 = vpop.f32.mrf.mxu0
    %2034 = vdwg.mxu0
    %2035 = vmatpush.bf16.msra.mxu0 %v1438
    %2036 = vmatpush.bf16.msra.mxu0 %v1432
    %2037 = vmatpush.bf16.msra.mxu0 %v1426
    %2038 = vmatpush.bf16.msra.mxu0 %v1420
    %2039 = vmatpush.bf16.msra.mxu0 %v1414
    %2040 = vmatpush.bf16.msra.mxu0 %v1408
    %2041 = vmatpush.bf16.msra.mxu0 %v1402
    %2042 = vmatpush.bf16.msra.mxu0 %v1396
    %2043 = vmatmul.bf16.gmra.mxu0 %v606
    %v2044 = vpop.f32.mrf.mxu0
    %v2045 = vadd.f32 %v808, %v2044
    %v2046 = vpop.f32.mrf.mxu0
    %2047 = vdwg.mxu0
    %2048 = vmatpush.bf16.msra.mxu0 %v1486
    %2049 = vmatpush.bf16.msra.mxu0 %v1480
    %2050 = vmatpush.bf16.msra.mxu0 %v1474
    %2051 = vmatpush.bf16.msra.mxu0 %v1468
    %2052 = vmatpush.bf16.msra.mxu0 %v1462
    %2053 = vmatpush.bf16.msra.mxu0 %v1456
    %2054 = vmatpush.bf16.msra.mxu0 %v1450
    %2055 = vmatpush.bf16.msra.mxu0 %v1444
    %2056 = vmatmul.bf16.gmra.mxu0 %v607
    %v2057 = vpop.f32.mrf.mxu0
    %v2058 = vadd.f32 %v2045, %v2057
    %v2059 = vpop.f32.mrf.mxu0
    %2060 = vdwg.mxu0
    %2061 = vmatpush.bf16.msra.mxu0 %v1534
    %2062 = vmatpush.bf16.msra.mxu0 %v1528
    %2063 = vmatpush.bf16.msra.mxu0 %v1522
    %2064 = vmatpush.bf16.msra.mxu0 %v1516
    %2065 = vmatpush.bf16.msra.mxu0 %v1510
    %2066 = vmatpush.bf16.msra.mxu0 %v1504
    %2067 = vmatpush.bf16.msra.mxu0 %v1498
    %2068 = vmatpush.bf16.msra.mxu0 %v1492
    %2069 = vmatmul.bf16.gmra.mxu0 %v608
    %v2070 = vpop.f32.mrf.mxu0
    %v2071 = vadd.f32 %v2058, %v2070
    %v2072 = vpop.f32.mrf.mxu0
    %2073 = vdwg.mxu0
    %2074 = vmatpush.bf16.msra.mxu0 %v1582
    %2075 = vmatpush.bf16.msra.mxu0 %v1576
    %2076 = vmatpush.bf16.msra.mxu0 %v1570
    %2077 = vmatpush.bf16.msra.mxu0 %v1564
    %2078 = vmatpush.bf16.msra.mxu0 %v1558
    %2079 = vmatpush.bf16.msra.mxu0 %v1552
    %2080 = vmatpush.bf16.msra.mxu0 %v1546
    %2081 = vmatpush.bf16.msra.mxu0 %v1540
    %2082 = vmatmul.bf16.gmra.mxu0 %v609
    %v2083 = vpop.f32.mrf.mxu0
    %v2084 = vadd.f32 %v2071, %v2083
    %v2085 = vpop.f32.mrf.mxu0
    %2086 = vdwg.mxu0
    %v2087 = vmax.f32 %v1824, 0.0
    %v2088 = vmax.f32 %v1876, 0.0
    %v2089 = vmax.f32 %v1928, 0.0
    %v2090 = vmax.f32 %v1980, 0.0
    %v2091 = vmax.f32 %v2032, 0.0
    %v2092 = vmax.f32 %v2084, 0.0
    %v2093 = vpack.c.bf16 %v2087, %v2087
    %v2094 = vpack.c.bf16 %v2088, %v2088
    %v2095 = vpack.c.bf16 %v2089, %v2089
    %v2096 = vpack.c.bf16 %v2090, %v2090
    %v2097 = vpack.c.bf16 %v2091, %v2091
    %v2098 = vpack.c.bf16 %v2092, %v2092
    %v2099 = vld [vmem:[#allocation8] sm:$0xf]
    %v2100 = vld [vmem:[#allocation8 + $0x4] sm:$0xf]
    %v2101 = vld [vmem:[#allocation8 + $0x8] sm:$0xf]
    %v2102 = vld [vmem:[#allocation8 + $0xc] sm:$0xf]
    %v2103 = vld [vmem:[#allocation8 + $0x10] sm:$0xf]
    %v2104 = vld [vmem:[#allocation8 + $0x14] sm:$0xf]
    %v2105 = vld [vmem:[#allocation8 + $0x18] sm:$0xf]
    %v2106 = vld [vmem:[#allocation8 + $0x1c] sm:$0xf]
    %v2107 = vld [vmem:[#allocation8 + $0x20] sm:$0xf]
    %v2108 = vld [vmem:[#allocation8 + $0x24] sm:$0xf]
    %v2109 = vld [vmem:[#allocation8 + $0x28] sm:$0xf]
    %v2110 = vld [vmem:[#allocation8 + $0x2c] sm:$0xf]
    %v2111 = vld [vmem:[#allocation8 + $0x30] sm:$0xf]
    %v2112 = vld [vmem:[#allocation8 + $0x34] sm:$0xf]
    %v2113 = vld [vmem:[#allocation8 + $0x38] sm:$0xf]
    %v2114 = vld [vmem:[#allocation8 + $0x3c] sm:$0xf]
    %v2115 = vld [vmem:[#allocation8 + $0x40] sm:$0xf]
    %v2116 = vld [vmem:[#allocation8 + $0x44] sm:$0xf]
    %v2117 = vld [vmem:[#allocation8 + $0x48] sm:$0xf]
    %v2118 = vld [vmem:[#allocation8 + $0x4c] sm:$0xf]
    %v2119 = vld [vmem:[#allocation8 + $0x50] sm:$0xf]
    %v2120 = vld [vmem:[#allocation8 + $0x54] sm:$0xf]
    %v2121 = vld [vmem:[#allocation8 + $0x58] sm:$0xf]
    %v2122 = vld [vmem:[#allocation8 + $0x5c] sm:$0xf]
    %v2123 = vld [vmem:[#allocation8 + $0x60] sm:$0xf]
    %v2124 = vld [vmem:[#allocation8 + $0x64] sm:$0xf]
    %v2125 = vld [vmem:[#allocation8 + $0x68] sm:$0xf]
    %v2126 = vld [vmem:[#allocation8 + $0x6c] sm:$0xf]
    %v2127 = vld [vmem:[#allocation8 + $0x70] sm:$0xf]
    %v2128 = vld [vmem:[#allocation8 + $0x74] sm:$0xf]
    %v2129 = vld [vmem:[#allocation8 + $0x78] sm:$0xf]
    %v2130 = vld [vmem:[#allocation8 + $0x7c] sm:$0xf]
    %v2131 = vld [vmem:[#allocation8 + $0x80] sm:$0xf]
    %v2132 = vld [vmem:[#allocation8 + $0x84] sm:$0xf]
    %v2133 = vld [vmem:[#allocation8 + $0x88] sm:$0xf]
    %v2134 = vld [vmem:[#allocation8 + $0x8c] sm:$0xf]
    %v2135 = vld [vmem:[#allocation8 + $0x90] sm:$0xf]
    %v2136 = vld [vmem:[#allocation8 + $0x94] sm:$0xf]
    %v2137 = vld [vmem:[#allocation8 + $0x98] sm:$0xf]
    %v2138 = vld [vmem:[#allocation8 + $0x9c] sm:$0xf]
    %v2139 = vld [vmem:[#allocation8 + $0xa0] sm:$0xf]
    %v2140 = vld [vmem:[#allocation8 + $0xa4] sm:$0xf]
    %v2141 = vld [vmem:[#allocation8 + $0xa8] sm:$0xf]
    %v2142 = vld [vmem:[#allocation8 + $0xac] sm:$0xf]
    %v2143 = vld [vmem:[#allocation8 + $0xb0] sm:$0xf]
    %v2144 = vld [vmem:[#allocation8 + $0xb4] sm:$0xf]
    %v2145 = vld [vmem:[#allocation8 + $0xb8] sm:$0xf]
    %v2146 = vld [vmem:[#allocation8 + $0xbc] sm:$0xf]
    %v2147 = vld [vmem:[#allocation8 + $0xc0] sm:$0xf]
    %v2148 = vld [vmem:[#allocation8 + $0xc4] sm:$0xf]
    %v2149 = vld [vmem:[#allocation8 + $0xc8] sm:$0xf]
    %v2150 = vld [vmem:[#allocation8 + $0xcc] sm:$0xf]
    %v2151 = vld [vmem:[#allocation8 + $0xd0] sm:$0xf]
    %v2152 = vld [vmem:[#allocation8 + $0xd4] sm:$0xf]
    %v2153 = vld [vmem:[#allocation8 + $0xd8] sm:$0xf]
    %v2154 = vld [vmem:[#allocation8 + $0xdc] sm:$0xf]
    %v2155 = vld [vmem:[#allocation8 + $0xe0] sm:$0xf]
    %v2156 = vld [vmem:[#allocation8 + $0xe4] sm:$0xf]
    %v2157 = vld [vmem:[#allocation8 + $0xe8] sm:$0xf]
    %v2158 = vld [vmem:[#allocation8 + $0xec] sm:$0xf]
    %v2159 = vld [vmem:[#allocation8 + $0xf0] sm:$0xf]
    %v2160 = vld [vmem:[#allocation8 + $0xf4] sm:$0xf]
    %v2161 = vld [vmem:[#allocation8 + $0xf8] sm:$0xf]
    %v2162 = vld [vmem:[#allocation8 + $0xfc] sm:$0xf]
    %v2163 = vld [vmem:[#allocation8 + $0x100] sm:$0xf]
    %v2164 = vld [vmem:[#allocation8 + $0x104] sm:$0xf]
    %v2165 = vld [vmem:[#allocation8 + $0x108] sm:$0xf]
    %v2166 = vld [vmem:[#allocation8 + $0x10c] sm:$0xf]
    %v2167 = vld [vmem:[#allocation8 + $0x110] sm:$0xf]
    %v2168 = vld [vmem:[#allocation8 + $0x114] sm:$0xf]
    %v2169 = vld [vmem:[#allocation8 + $0x118] sm:$0xf]
    %v2170 = vld [vmem:[#allocation8 + $0x11c] sm:$0xf]
    %v2171 = vld [vmem:[#allocation8 + $0x120] sm:$0xf]
    %v2172 = vld [vmem:[#allocation8 + $0x124] sm:$0xf]
    %v2173 = vld [vmem:[#allocation8 + $0x128] sm:$0xf]
    %v2174 = vld [vmem:[#allocation8 + $0x12c] sm:$0xf]
    %v2175 = vld [vmem:[#allocation8 + $0x130] sm:$0xf]
    %v2176 = vld [vmem:[#allocation8 + $0x134] sm:$0xf]
    %v2177 = vld [vmem:[#allocation8 + $0x138] sm:$0xf]
    %v2178 = vld [vmem:[#allocation8 + $0x13c] sm:$0xf]
    %v2179 = vld [vmem:[#allocation8 + $0x140] sm:$0xf]
    %v2180 = vld [vmem:[#allocation8 + $0x144] sm:$0xf]
    %v2181 = vld [vmem:[#allocation8 + $0x148] sm:$0xf]
    %v2182 = vld [vmem:[#allocation8 + $0x14c] sm:$0xf]
    %v2183 = vld [vmem:[#allocation8 + $0x150] sm:$0xf]
    %v2184 = vld [vmem:[#allocation8 + $0x154] sm:$0xf]
    %v2185 = vld [vmem:[#allocation8 + $0x158] sm:$0xf]
    %v2186 = vld [vmem:[#allocation8 + $0x15c] sm:$0xf]
    %v2187 = vld [vmem:[#allocation8 + $0x160] sm:$0xf]
    %v2188 = vld [vmem:[#allocation8 + $0x164] sm:$0xf]
    %v2189 = vld [vmem:[#allocation8 + $0x168] sm:$0xf]
    %v2190 = vld [vmem:[#allocation8 + $0x16c] sm:$0xf]
    %v2191 = vld [vmem:[#allocation8 + $0x170] sm:$0xf]
    %v2192 = vld [vmem:[#allocation8 + $0x174] sm:$0xf]
    %v2193 = vld [vmem:[#allocation8 + $0x178] sm:$0xf]
    %v2194 = vld [vmem:[#allocation8 + $0x17c] sm:$0xf]
    %v2196 = vperm.slane %v104, 0
    %v2294 = vunpack.c.l.b16 %v2099
    %v2295 = vunpack.c.l.b16 %v2100
    %v2296 = vunpack.c.l.b16 %v2101
    %v2297 = vunpack.c.l.b16 %v2102
    %v2298 = vunpack.c.l.b16 %v2103
    %v2299 = vunpack.c.l.b16 %v2104
    %v2300 = vunpack.c.l.b16 %v2105
    %v2301 = vunpack.c.l.b16 %v2106
    %v2302 = vunpack.c.l.b16 %v2107
    %v2303 = vunpack.c.l.b16 %v2108
    %v2304 = vunpack.c.l.b16 %v2109
    %v2305 = vunpack.c.l.b16 %v2110
    %v2306 = vunpack.c.l.b16 %v2111
    %v2307 = vunpack.c.l.b16 %v2112
    %v2308 = vunpack.c.l.b16 %v2113
    %v2309 = vunpack.c.l.b16 %v2114
    %v2310 = vunpack.c.l.b16 %v2115
    %v2311 = vunpack.c.l.b16 %v2116
    %v2312 = vunpack.c.l.b16 %v2117
    %v2313 = vunpack.c.l.b16 %v2118
    %v2314 = vunpack.c.l.b16 %v2119
    %v2315 = vunpack.c.l.b16 %v2120
    %v2316 = vunpack.c.l.b16 %v2121
    %v2317 = vunpack.c.l.b16 %v2122
    %v2318 = vunpack.c.l.b16 %v2123
    %v2319 = vunpack.c.l.b16 %v2124
    %v2320 = vunpack.c.l.b16 %v2125
    %v2321 = vunpack.c.l.b16 %v2126
    %v2322 = vunpack.c.l.b16 %v2127
    %v2323 = vunpack.c.l.b16 %v2128
    %v2324 = vunpack.c.l.b16 %v2129
    %v2325 = vunpack.c.l.b16 %v2130
    %v2326 = vunpack.c.l.b16 %v2131
    %v2327 = vunpack.c.l.b16 %v2132
    %v2328 = vunpack.c.l.b16 %v2133
    %v2329 = vunpack.c.l.b16 %v2134
    %v2330 = vunpack.c.l.b16 %v2135
    %v2331 = vunpack.c.l.b16 %v2136
    %v2332 = vunpack.c.l.b16 %v2137
    %v2333 = vunpack.c.l.b16 %v2138
    %v2334 = vunpack.c.l.b16 %v2139
    %v2335 = vunpack.c.l.b16 %v2140
    %v2336 = vunpack.c.l.b16 %v2141
    %v2337 = vunpack.c.l.b16 %v2142
    %v2338 = vunpack.c.l.b16 %v2143
    %v2339 = vunpack.c.l.b16 %v2144
    %v2340 = vunpack.c.l.b16 %v2145
    %v2341 = vunpack.c.l.b16 %v2146
    %v2342 = vunpack.c.l.b16 %v2147
    %v2343 = vunpack.c.l.b16 %v2148
    %v2344 = vunpack.c.l.b16 %v2149
    %v2345 = vunpack.c.l.b16 %v2150
    %v2346 = vunpack.c.l.b16 %v2151
    %v2347 = vunpack.c.l.b16 %v2152
    %v2348 = vunpack.c.l.b16 %v2153
    %v2349 = vunpack.c.l.b16 %v2154
    %v2350 = vunpack.c.l.b16 %v2155
    %v2351 = vunpack.c.l.b16 %v2156
    %v2352 = vunpack.c.l.b16 %v2157
    %v2353 = vunpack.c.l.b16 %v2158
    %v2354 = vunpack.c.l.b16 %v2159
    %v2355 = vunpack.c.l.b16 %v2160
    %v2356 = vunpack.c.l.b16 %v2161
    %v2357 = vunpack.c.l.b16 %v2162
    %v2358 = vunpack.c.l.b16 %v2163
    %v2359 = vunpack.c.l.b16 %v2164
    %v2360 = vunpack.c.l.b16 %v2165
    %v2361 = vunpack.c.l.b16 %v2166
    %v2362 = vunpack.c.l.b16 %v2167
    %v2363 = vunpack.c.l.b16 %v2168
    %v2364 = vunpack.c.l.b16 %v2169
    %v2365 = vunpack.c.l.b16 %v2170
    %v2366 = vunpack.c.l.b16 %v2171
    %v2367 = vunpack.c.l.b16 %v2172
    %v2368 = vunpack.c.l.b16 %v2173
    %v2369 = vunpack.c.l.b16 %v2174
    %v2370 = vunpack.c.l.b16 %v2175
    %v2371 = vunpack.c.l.b16 %v2176
    %v2372 = vunpack.c.l.b16 %v2177
    %v2373 = vunpack.c.l.b16 %v2178
    %v2374 = vunpack.c.l.b16 %v2179
    %v2375 = vunpack.c.l.b16 %v2180
    %v2376 = vunpack.c.l.b16 %v2181
    %v2377 = vunpack.c.l.b16 %v2182
    %v2378 = vunpack.c.l.b16 %v2183
    %v2379 = vunpack.c.l.b16 %v2184
    %v2380 = vunpack.c.l.b16 %v2185
    %v2381 = vunpack.c.l.b16 %v2186
    %v2382 = vunpack.c.l.b16 %v2187
    %v2383 = vunpack.c.l.b16 %v2188
    %v2384 = vunpack.c.l.b16 %v2189
    %v2385 = vunpack.c.l.b16 %v2190
    %v2386 = vunpack.c.l.b16 %v2191
    %v2387 = vunpack.c.l.b16 %v2192
    %v2388 = vunpack.c.l.b16 %v2193
    %v2389 = vunpack.c.l.b16 %v2194
    %v2390 = vpack.c.b16 %v2295, %v2294
    %v2391 = vpack.c.b16 %v2297, %v2296
    %v2392 = vpack.c.b16 %v2299, %v2298
    %v2393 = vpack.c.b16 %v2301, %v2300
    %v2394 = vpack.c.b16 %v2303, %v2302
    %v2395 = vpack.c.b16 %v2305, %v2304
    %v2396 = vpack.c.b16 %v2307, %v2306
    %v2397 = vpack.c.b16 %v2309, %v2308
    %v2398 = vpack.c.b16 %v2311, %v2310
    %v2399 = vpack.c.b16 %v2313, %v2312
    %v2400 = vpack.c.b16 %v2315, %v2314
    %v2401 = vpack.c.b16 %v2317, %v2316
    %v2402 = vpack.c.b16 %v2319, %v2318
    %v2403 = vpack.c.b16 %v2321, %v2320
    %v2404 = vpack.c.b16 %v2323, %v2322
    %v2405 = vpack.c.b16 %v2325, %v2324
    %v2406 = vpack.c.b16 %v2327, %v2326
    %v2407 = vpack.c.b16 %v2329, %v2328
    %v2408 = vpack.c.b16 %v2331, %v2330
    %v2409 = vpack.c.b16 %v2333, %v2332
    %v2410 = vpack.c.b16 %v2335, %v2334
    %v2411 = vpack.c.b16 %v2337, %v2336
    %v2412 = vpack.c.b16 %v2339, %v2338
    %v2413 = vpack.c.b16 %v2341, %v2340
    %v2414 = vpack.c.b16 %v2343, %v2342
    %v2415 = vpack.c.b16 %v2345, %v2344
    %v2416 = vpack.c.b16 %v2347, %v2346
    %v2417 = vpack.c.b16 %v2349, %v2348
    %v2418 = vpack.c.b16 %v2351, %v2350
    %v2419 = vpack.c.b16 %v2353, %v2352
    %v2420 = vpack.c.b16 %v2355, %v2354
    %v2421 = vpack.c.b16 %v2357, %v2356
    %v2422 = vpack.c.b16 %v2359, %v2358
    %v2423 = vpack.c.b16 %v2361, %v2360
    %v2424 = vpack.c.b16 %v2363, %v2362
    %v2425 = vpack.c.b16 %v2365, %v2364
    %v2426 = vpack.c.b16 %v2367, %v2366
    %v2427 = vpack.c.b16 %v2369, %v2368
    %v2428 = vpack.c.b16 %v2371, %v2370
    %v2429 = vpack.c.b16 %v2373, %v2372
    %v2430 = vpack.c.b16 %v2375, %v2374
    %v2431 = vpack.c.b16 %v2377, %v2376
    %v2432 = vpack.c.b16 %v2379, %v2378
    %v2433 = vpack.c.b16 %v2381, %v2380
    %v2434 = vpack.c.b16 %v2383, %v2382
    %v2435 = vpack.c.b16 %v2385, %v2384
    %v2436 = vpack.c.b16 %v2387, %v2386
    %v2437 = vpack.c.b16 %v2389, %v2388
    %2486 = vmatpush.bf16.msra.mxu0 %v2397
    %2487 = vmatpush.bf16.msra.mxu0 %v2396
    %2488 = vmatpush.bf16.msra.mxu0 %v2395
    %2489 = vmatpush.bf16.msra.mxu0 %v2394
    %2490 = vmatpush.bf16.msra.mxu0 %v2393
    %2491 = vmatpush.bf16.msra.mxu0 %v2392
    %2492 = vmatpush.bf16.msra.mxu0 %v2391
    %2493 = vmatpush.bf16.msra.mxu0 %v2390
    %2494 = vmatmul.bf16.gmra.mxu0 %v2093
    %v2495 = vpop.f32.mrf.mxu0
    %v2496 = vadd.f32 %v2196, %v2495
    %v2497 = vpop.f32.mrf.mxu0
    %2498 = vdwg.mxu0
    %2499 = vmatpush.bf16.msra.mxu0 %v2405
    %2500 = vmatpush.bf16.msra.mxu0 %v2404
    %2501 = vmatpush.bf16.msra.mxu0 %v2403
    %2502 = vmatpush.bf16.msra.mxu0 %v2402
    %2503 = vmatpush.bf16.msra.mxu0 %v2401
    %2504 = vmatpush.bf16.msra.mxu0 %v2400
    %2505 = vmatpush.bf16.msra.mxu0 %v2399
    %2506 = vmatpush.bf16.msra.mxu0 %v2398
    %2507 = vmatmul.bf16.gmra.mxu0 %v2094
    %v2508 = vpop.f32.mrf.mxu0
    %v2509 = vadd.f32 %v2496, %v2508
    %v2510 = vpop.f32.mrf.mxu0
    %2511 = vdwg.mxu0
    %2512 = vmatpush.bf16.msra.mxu0 %v2413
    %2513 = vmatpush.bf16.msra.mxu0 %v2412
    %2514 = vmatpush.bf16.msra.mxu0 %v2411
    %2515 = vmatpush.bf16.msra.mxu0 %v2410
    %2516 = vmatpush.bf16.msra.mxu0 %v2409
    %2517 = vmatpush.bf16.msra.mxu0 %v2408
    %2518 = vmatpush.bf16.msra.mxu0 %v2407
    %2519 = vmatpush.bf16.msra.mxu0 %v2406
    %2520 = vmatmul.bf16.gmra.mxu0 %v2095
    %v2521 = vpop.f32.mrf.mxu0
    %v2522 = vadd.f32 %v2509, %v2521
    %v2523 = vpop.f32.mrf.mxu0
    %2524 = vdwg.mxu0
    %2525 = vmatpush.bf16.msra.mxu0 %v2421
    %2526 = vmatpush.bf16.msra.mxu0 %v2420
    %2527 = vmatpush.bf16.msra.mxu0 %v2419
    %2528 = vmatpush.bf16.msra.mxu0 %v2418
    %2529 = vmatpush.bf16.msra.mxu0 %v2417
    %2530 = vmatpush.bf16.msra.mxu0 %v2416
    %2531 = vmatpush.bf16.msra.mxu0 %v2415
    %2532 = vmatpush.bf16.msra.mxu0 %v2414
    %2533 = vmatmul.bf16.gmra.mxu0 %v2096
    %v2534 = vpop.f32.mrf.mxu0
    %v2535 = vadd.f32 %v2522, %v2534
    %v2536 = vpop.f32.mrf.mxu0
    %2537 = vdwg.mxu0
    %2538 = vmatpush.bf16.msra.mxu0 %v2429
    %2539 = vmatpush.bf16.msra.mxu0 %v2428
    %2540 = vmatpush.bf16.msra.mxu0 %v2427
    %2541 = vmatpush.bf16.msra.mxu0 %v2426
    %2542 = vmatpush.bf16.msra.mxu0 %v2425
    %2543 = vmatpush.bf16.msra.mxu0 %v2424
    %2544 = vmatpush.bf16.msra.mxu0 %v2423
    %2545 = vmatpush.bf16.msra.mxu0 %v2422
    %2546 = vmatmul.bf16.gmra.mxu0 %v2097
    %v2547 = vpop.f32.mrf.mxu0
    %v2548 = vadd.f32 %v2535, %v2547
    %v2549 = vpop.f32.mrf.mxu0
    %2550 = vdwg.mxu0
    %2551 = vmatpush.bf16.msra.mxu0 %v2437
    %2552 = vmatpush.bf16.msra.mxu0 %v2436
    %2553 = vmatpush.bf16.msra.mxu0 %v2435
    %2554 = vmatpush.bf16.msra.mxu0 %v2434
    %2555 = vmatpush.bf16.msra.mxu0 %v2433
    %2556 = vmatpush.bf16.msra.mxu0 %v2432
    %2557 = vmatpush.bf16.msra.mxu0 %v2431
    %2558 = vmatpush.bf16.msra.mxu0 %v2430
    %2559 = vmatmul.bf16.gmra.mxu0 %v2098
    %v2560 = vpop.f32.mrf.mxu0
    %v2561 = vadd.f32 %v2548, %v2560
    %v2562 = vpop.f32.mrf.mxu0
    %2563 = vdwg.mxu0
    %2564 = vst [vmem:[#allocation11] sm:$0xff] %v2561
    // Predicated region
    $region42: #{tpu_custom_call.1} parent=1 // pred_check
      _
    $region43: #{tpu_custom_call.1} parent=1 // pred_check_branch
      %2566 = sbr.rel (0) target = $region45
    $region44: #{tpu_custom_call.1} parent=1 // pred_region
      %2568 = vsyncadd [#allocation4], 0
      %s2570 = sshll.u32 [#allocation11], 4
      %s2571 = int_to_ptr.vmem [resolvable:$true] %s2570
      %s2572 = sshll.u32 %s5, 4
      %s2573 = int_to_ptr.hbm [resolvable:$true] %s2572
      %2575 = dma.vmem_to_hbm [thread:$0]  %s2571, 128, %s2573, [#allocation4]
    $region45: #{tpu_custom_call.1} parent=1 // pred_fallthru
      _
    // Predicated region
    $region46: #{tpu_custom_call.1} parent=1 // pred_check
      _
    $region47: #{tpu_custom_call.1} parent=1 // pred_check_branch
      %2577 = sbr.rel (0) target = $region49
    $region48: #{tpu_custom_call.1} parent=1 // pred_region
      %2579 = dma.done [#allocation4], 128
    $region49: #{tpu_custom_call.1} parent=1 // pred_fallthru
      _
    %2580 = vsyncpa [#allocation3], 1
    %2581 = vsyncpa [#allocation6], 1
    %2582 = vsyncpa [#allocation9], 1
    %2583 = vsyncpa [#allocation4], 1

</llo_original>
